<compile_context>
chip_gen: v7x
topology: tpu7x:2x2x1
jax: 0.10.0
libtpu: 0.0.40
codegen_flags: <defaults>
</compile_context>

<pallas_src>
from functools import partial

import jax
import jax.numpy as jnp
from jax.experimental import pallas as pl
from jax.experimental.pallas import tpu as pltpu


# ----------------------------------------------------------------------------
# Fused Pallas kernel: depthwise conv + ReLU + pointwise 1x1 conv
# ----------------------------------------------------------------------------
def _sepconv_kernel(x_ref, wdw_ref, bdw_ref, wpw_ref, bpw_ref, o_ref,
                    *, ksize, dilation, h_out, w_out):
    """One batch element. x_ref: (1, H_pad, W_pad, C_in) NHWC (padded)."""
    c_in = wdw_ref.shape[1]
    x = x_ref[0]                                    # (H_pad, W_pad, C_in)
    wdw = wdw_ref[...]                              # (K*K, C_in)

    # Depthwise conv: K*K shifted taps, VPU multiply-add, bias folded in.
    acc = jnp.zeros((h_out, w_out, c_in), jnp.float32) + bdw_ref[...]
    for t in range(ksize * ksize):
        u = (t // ksize) * dilation
        v = (t % ksize) * dilation
        acc = acc + x[u:u + h_out, v:v + w_out, :] * wdw[t]

    # Activation (nn.ReLU default of the module).
    acc = jnp.maximum(acc, 0.0)

    # Pointwise 1x1 conv == channel matmul on the MXU, f32 accumulation.
    out = jnp.dot(acc.reshape(h_out * w_out, c_in), wpw_ref[...],
                  preferred_element_type=jnp.float32) + bpw_ref[...]
    o_ref[0] = out.reshape(h_out, w_out, -1)        # lane-dense (C_out on lanes)


# ----------------------------------------------------------------------------
# Wrapper: PyTorch NCHW / weight layouts in, NCHW out
# ----------------------------------------------------------------------------
def sep_conv2d(x, w_dw, b_dw, w_pw, b_pw, *, stride=1, padding=0, dilation=1):
    """x: (B, C_in, H, W); w_dw: (C_in, 1, K, K); w_pw: (C_out, C_in, 1, 1)."""
    assert stride == 1, "TODO(synk): stride > 1 not implemented in the kernel"
    B, C_in, H, W = x.shape
    C_out = w_pw.shape[0]
    K = w_dw.shape[-1]
    H_out = H + 2 * padding - dilation * (K - 1)
    W_out = W + 2 * padding - dilation * (K - 1)
    H_pad, W_pad = H + 2 * padding, W + 2 * padding

    # NHWC so channels sit on the lane axis; pad spatially outside the kernel.
    x_nhwc = jnp.transpose(x, (0, 2, 3, 1)).astype(jnp.float32)
    x_pad = jnp.pad(x_nhwc,
                    ((0, 0), (padding, padding), (padding, padding), (0, 0)))

    wdw = jnp.transpose(w_dw.reshape(C_in, K * K), (1, 0)).astype(jnp.float32)
    wpw = jnp.transpose(w_pw.reshape(C_out, C_in), (1, 0)).astype(jnp.float32)
    bdw = b_dw.reshape(1, C_in).astype(jnp.float32)
    bpw = b_pw.reshape(1, C_out).astype(jnp.float32)

    kernel = partial(_sepconv_kernel, ksize=K, dilation=dilation,
                     h_out=H_out, w_out=W_out)

    out_nhwc = pl.pallas_call(
        kernel,
        out_shape=jax.ShapeDtypeStruct((B, H_out, W_out, C_out), jnp.float32),
        grid=(B,),
        in_specs=[
            pl.BlockSpec((1, H_pad, W_pad, C_in), lambda b: (b, 0, 0, 0)),
            pl.BlockSpec((K * K, C_in), lambda b: (0, 0)),   # constant -> no re-DMA
            pl.BlockSpec((1, C_in), lambda b: (0, 0)),
            pl.BlockSpec((C_in, C_out), lambda b: (0, 0)),
            pl.BlockSpec((1, C_out), lambda b: (0, 0)),
        ],
        out_specs=pl.BlockSpec((1, H_out, W_out, C_out),
                               lambda b: (b, 0, 0, 0)),
        compiler_params=pltpu.CompilerParams(
            dimension_semantics=("parallel",)),
    )(x_pad, wdw, bdw, wpw, bpw)

    return jnp.transpose(out_nhwc, (0, 3, 1, 2))    # back to NCHW


# ----------------------------------------------------------------------------
# Pure-JAX reference (for correctness check)
# ----------------------------------------------------------------------------
def reference_sepconv(x, w_dw, b_dw, w_pw, b_pw, *, stride, padding, dilation):
    C_in = x.shape[1]
    y = jax.lax.conv_general_dilated(
        x, w_dw, window_strides=(stride, stride),
        padding=[(padding, padding), (padding, padding)],
        rhs_dilation=(dilation, dilation),
        dimension_numbers=("NCHW", "OIHW", "NCHW"),
        feature_group_count=C_in)
    y = y + b_dw[None, :, None, None]
    y = jnp.maximum(y, 0.0)
    z = jax.lax.conv_general_dilated(
        y, w_pw, window_strides=(1, 1), padding="VALID",
        dimension_numbers=("NCHW", "OIHW", "NCHW"))
    return z + b_pw[None, :, None, None]


# ----------------------------------------------------------------------------
if __name__ == "__main__":
    # Small config consistent with the module (Uformer ConvProjection style):
    # kernel_size=3, stride=1, padding=1, dilation=1, ReLU activation.
    B, C_in, C_out, H, W = 2, 32, 64, 16, 16
    K, stride, padding, dilation = 3, 1, 1, 1

    key = jax.random.PRNGKey(0)
    kx, k1, k2, k3, k4 = jax.random.split(key, 5)
    x = jax.random.normal(kx, (B, C_in, H, W), jnp.float32)
    w_dw = 0.1 * jax.random.normal(k1, (C_in, 1, K, K), jnp.float32)
    b_dw = 0.1 * jax.random.normal(k2, (C_in,), jnp.float32)
    w_pw = 0.1 * jax.random.normal(k3, (C_out, C_in, 1, 1), jnp.float32)
    b_pw = 0.1 * jax.random.normal(k4, (C_out,), jnp.float32)

    out = sep_conv2d(x, w_dw, b_dw, w_pw, b_pw,
                     stride=stride, padding=padding, dilation=dilation)
    out = jax.block_until_ready(out)

    ref = reference_sepconv(x, w_dw, b_dw, w_pw, b_pw,
                            stride=stride, padding=padding, dilation=dilation)

    assert out.shape == (B, C_out, H, W)
    max_err = float(jnp.max(jnp.abs(out - ref)))
    assert jnp.allclose(out, ref, atol=1e-4, rtol=1e-4), max_err

    print("KERNEL_OK")
</pallas_src>

<mosaic_0001>
module attributes {stable_mosaic.version = 11 : i64} {
  func.func @_sepconv_kernel(%arg0: i32, %arg1: memref<1x18x18x32xf32, #tpu.memory_space<vmem>>, %arg2: memref<9x32xf32, #tpu.memory_space<vmem>>, %arg3: memref<1x32xf32, #tpu.memory_space<vmem>>, %arg4: memref<32x64xf32, #tpu.memory_space<vmem>>, %arg5: memref<1x64xf32, #tpu.memory_space<vmem>>, %arg6: memref<1x16x16x64xf32, #tpu.memory_space<vmem>>) attributes {dimension_semantics = [#tpu.dimension_semantics<parallel>], iteration_bounds = array<i64: 2>, scalar_prefetch = 0 : i64, scratch_operands = 0 : i64, tpu.core_type = #tpu.core_type<tc>, window_params = [{transform_indices = @transform_0, window_bounds = array<i64: 1, 18, 18, 32>}, {pipeline_mode = #tpu.pipeline_mode<synchronous>, transform_indices = @transform_1, window_bounds = array<i64: 9, 32>}, {pipeline_mode = #tpu.pipeline_mode<synchronous>, transform_indices = @transform_2, window_bounds = array<i64: 1, 32>}, {pipeline_mode = #tpu.pipeline_mode<synchronous>, transform_indices = @transform_3, window_bounds = array<i64: 32, 64>}, {pipeline_mode = #tpu.pipeline_mode<synchronous>, transform_indices = @transform_4, window_bounds = array<i64: 1, 64>}, {transform_indices = @transform_5, window_bounds = array<i64: 1, 16, 16, 64>}]} {
    %c0 = arith.constant 0 : index
    %c0_0 = arith.constant 0 : index
    %c0_1 = arith.constant 0 : index
    %c0_2 = arith.constant 0 : index
    %0 = vector.load %arg1[%c0, %c0_0, %c0_1, %c0_2] : memref<1x18x18x32xf32, #tpu.memory_space<vmem>>, vector<1x18x18x32xf32>
    %1 = vector.shape_cast %0 : vector<1x18x18x32xf32> to vector<18x18x32xf32>
    %c0_3 = arith.constant 0 : index
    %c0_4 = arith.constant 0 : index
    %2 = vector.load %arg2[%c0_3, %c0_4] : memref<9x32xf32, #tpu.memory_space<vmem>>, vector<9x32xf32>
    %cst = arith.constant 0.000000e+00 : f32
    %3 = vector.broadcast %cst : f32 to vector<16x16x32xf32>
    %c0_5 = arith.constant 0 : index
    %c0_6 = arith.constant 0 : index
    %4 = vector.load %arg3[%c0_5, %c0_6] : memref<1x32xf32, #tpu.memory_space<vmem>>, vector<1x32xf32>
    %5 = vector.shape_cast %4 : vector<1x32xf32> to vector<1x1x32xf32>
    %6 = vector.broadcast %5 : vector<1x1x32xf32> to vector<16x16x32xf32>
    %7 = arith.addf %3, %6 : vector<16x16x32xf32>
    %8 = vector.extract_strided_slice %1 {offsets = [0, 0, 0], sizes = [16, 16, 32], strides = [1, 1, 1]} : vector<18x18x32xf32> to vector<16x16x32xf32>
    %9 = vector.extract_strided_slice %2 {offsets = [0, 0], sizes = [1, 32], strides = [1, 1]} : vector<9x32xf32> to vector<1x32xf32>
    %10 = vector.shape_cast %9 : vector<1x32xf32> to vector<32xf32>
    %11 = vector.shape_cast %10 : vector<32xf32> to vector<1x1x32xf32>
    %12 = vector.broadcast %11 : vector<1x1x32xf32> to vector<16x16x32xf32>
    %13 = arith.mulf %8, %12 : vector<16x16x32xf32>
    %14 = arith.addf %7, %13 : vector<16x16x32xf32>
    %15 = vector.extract_strided_slice %1 {offsets = [0, 1, 0], sizes = [16, 16, 32], strides = [1, 1, 1]} : vector<18x18x32xf32> to vector<16x16x32xf32>
    %16 = vector.extract_strided_slice %2 {offsets = [1, 0], sizes = [1, 32], strides = [1, 1]} : vector<9x32xf32> to vector<1x32xf32>
    %17 = vector.shape_cast %16 : vector<1x32xf32> to vector<32xf32>
    %18 = vector.shape_cast %17 : vector<32xf32> to vector<1x1x32xf32>
    %19 = vector.broadcast %18 : vector<1x1x32xf32> to vector<16x16x32xf32>
    %20 = arith.mulf %15, %19 : vector<16x16x32xf32>
    %21 = arith.addf %14, %20 : vector<16x16x32xf32>
    %22 = vector.extract_strided_slice %1 {offsets = [0, 2, 0], sizes = [16, 16, 32], strides = [1, 1, 1]} : vector<18x18x32xf32> to vector<16x16x32xf32>
    %23 = vector.extract_strided_slice %2 {offsets = [2, 0], sizes = [1, 32], strides = [1, 1]} : vector<9x32xf32> to vector<1x32xf32>
    %24 = vector.shape_cast %23 : vector<1x32xf32> to vector<32xf32>
    %25 = vector.shape_cast %24 : vector<32xf32> to vector<1x1x32xf32>
    %26 = vector.broadcast %25 : vector<1x1x32xf32> to vector<16x16x32xf32>
    %27 = arith.mulf %22, %26 : vector<16x16x32xf32>
    %28 = arith.addf %21, %27 : vector<16x16x32xf32>
    %29 = vector.extract_strided_slice %1 {offsets = [1, 0, 0], sizes = [16, 16, 32], strides = [1, 1, 1]} : vector<18x18x32xf32> to vector<16x16x32xf32>
    %30 = vector.extract_strided_slice %2 {offsets = [3, 0], sizes = [1, 32], strides = [1, 1]} : vector<9x32xf32> to vector<1x32xf32>
    %31 = vector.shape_cast %30 : vector<1x32xf32> to vector<32xf32>
    %32 = vector.shape_cast %31 : vector<32xf32> to vector<1x1x32xf32>
    %33 = vector.broadcast %32 : vector<1x1x32xf32> to vector<16x16x32xf32>
    %34 = arith.mulf %29, %33 : vector<16x16x32xf32>
    %35 = arith.addf %28, %34 : vector<16x16x32xf32>
    %36 = vector.extract_strided_slice %1 {offsets = [1, 1, 0], sizes = [16, 16, 32], strides = [1, 1, 1]} : vector<18x18x32xf32> to vector<16x16x32xf32>
    %37 = vector.extract_strided_slice %2 {offsets = [4, 0], sizes = [1, 32], strides = [1, 1]} : vector<9x32xf32> to vector<1x32xf32>
    %38 = vector.shape_cast %37 : vector<1x32xf32> to vector<32xf32>
    %39 = vector.shape_cast %38 : vector<32xf32> to vector<1x1x32xf32>
    %40 = vector.broadcast %39 : vector<1x1x32xf32> to vector<16x16x32xf32>
    %41 = arith.mulf %36, %40 : vector<16x16x32xf32>
    %42 = arith.addf %35, %41 : vector<16x16x32xf32>
    %43 = vector.extract_strided_slice %1 {offsets = [1, 2, 0], sizes = [16, 16, 32], strides = [1, 1, 1]} : vector<18x18x32xf32> to vector<16x16x32xf32>
    %44 = vector.extract_strided_slice %2 {offsets = [5, 0], sizes = [1, 32], strides = [1, 1]} : vector<9x32xf32> to vector<1x32xf32>
    %45 = vector.shape_cast %44 : vector<1x32xf32> to vector<32xf32>
    %46 = vector.shape_cast %45 : vector<32xf32> to vector<1x1x32xf32>
    %47 = vector.broadcast %46 : vector<1x1x32xf32> to vector<16x16x32xf32>
    %48 = arith.mulf %43, %47 : vector<16x16x32xf32>
    %49 = arith.addf %42, %48 : vector<16x16x32xf32>
    %50 = vector.extract_strided_slice %1 {offsets = [2, 0, 0], sizes = [16, 16, 32], strides = [1, 1, 1]} : vector<18x18x32xf32> to vector<16x16x32xf32>
    %51 = vector.extract_strided_slice %2 {offsets = [6, 0], sizes = [1, 32], strides = [1, 1]} : vector<9x32xf32> to vector<1x32xf32>
    %52 = vector.shape_cast %51 : vector<1x32xf32> to vector<32xf32>
    %53 = vector.shape_cast %52 : vector<32xf32> to vector<1x1x32xf32>
    %54 = vector.broadcast %53 : vector<1x1x32xf32> to vector<16x16x32xf32>
    %55 = arith.mulf %50, %54 : vector<16x16x32xf32>
    %56 = arith.addf %49, %55 : vector<16x16x32xf32>
    %57 = vector.extract_strided_slice %1 {offsets = [2, 1, 0], sizes = [16, 16, 32], strides = [1, 1, 1]} : vector<18x18x32xf32> to vector<16x16x32xf32>
    %58 = vector.extract_strided_slice %2 {offsets = [7, 0], sizes = [1, 32], strides = [1, 1]} : vector<9x32xf32> to vector<1x32xf32>
    %59 = vector.shape_cast %58 : vector<1x32xf32> to vector<32xf32>
    %60 = vector.shape_cast %59 : vector<32xf32> to vector<1x1x32xf32>
    %61 = vector.broadcast %60 : vector<1x1x32xf32> to vector<16x16x32xf32>
    %62 = arith.mulf %57, %61 : vector<16x16x32xf32>
    %63 = arith.addf %56, %62 : vector<16x16x32xf32>
    %64 = vector.extract_strided_slice %1 {offsets = [2, 2, 0], sizes = [16, 16, 32], strides = [1, 1, 1]} : vector<18x18x32xf32> to vector<16x16x32xf32>
    %65 = vector.extract_strided_slice %2 {offsets = [8, 0], sizes = [1, 32], strides = [1, 1]} : vector<9x32xf32> to vector<1x32xf32>
    %66 = vector.shape_cast %65 : vector<1x32xf32> to vector<32xf32>
    %67 = vector.shape_cast %66 : vector<32xf32> to vector<1x1x32xf32>
    %68 = vector.broadcast %67 : vector<1x1x32xf32> to vector<16x16x32xf32>
    %69 = arith.mulf %64, %68 : vector<16x16x32xf32>
    %70 = arith.addf %63, %69 : vector<16x16x32xf32>
    %cst_7 = arith.constant 0.000000e+00 : f32
    %71 = vector.broadcast %cst_7 : f32 to vector<16x16x32xf32>
    %72 = arith.maximumf %70, %71 : vector<16x16x32xf32>
    %73 = vector.shape_cast %72 : vector<16x16x32xf32> to vector<256x32xf32>
    %c0_8 = arith.constant 0 : index
    %c0_9 = arith.constant 0 : index
    %74 = vector.load %arg4[%c0_8, %c0_9] : memref<32x64xf32, #tpu.memory_space<vmem>>, vector<32x64xf32>
    %cst_10 = arith.constant dense<0.000000e+00> : vector<256x64xf32>
    %75 = tpu.matmul %73, %74, %cst_10 {dimension_numbers = #tpu.dot_dimension_numbers<[1], [0], [0], [1], [0, 0, 1, 1], [], []>} : vector<256x32xf32>, vector<32x64xf32>, vector<256x64xf32> -> vector<256x64xf32>
    %c0_11 = arith.constant 0 : index
    %c0_12 = arith.constant 0 : index
    %76 = vector.load %arg5[%c0_11, %c0_12] : memref<1x64xf32, #tpu.memory_space<vmem>>, vector<1x64xf32>
    %77 = vector.broadcast %76 : vector<1x64xf32> to vector<256x64xf32>
    %78 = arith.addf %75, %77 : vector<256x64xf32>
    %79 = vector.shape_cast %78 : vector<256x64xf32> to vector<16x16x64xf32>
    %c0_13 = arith.constant 0 : index
    %c0_14 = arith.constant 0 : index
    %c0_15 = arith.constant 0 : index
    %c0_16 = arith.constant 0 : index
    %80 = vector.load %arg6[%c0_13, %c0_14, %c0_15, %c0_16] : memref<1x16x16x64xf32, #tpu.memory_space<vmem>>, vector<1x16x16x64xf32>
    %81 = vector.shape_cast %80 : vector<1x16x16x64xf32> to vector<16x16x64xf32>
    %82 = vector.shape_cast %79 : vector<16x16x64xf32> to vector<1x16x16x64xf32>
    tpu.vector_store %arg6[%c0_13, %c0_14, %c0_15, %c0_16], %82 {strides = array<i32>} : memref<1x16x16x64xf32, #tpu.memory_space<vmem>>, vector<1x16x16x64xf32>,
    return
  }
  func.func @transform_0(%arg0: i32) -> (i32, i32, i32, i32) {
    %c0_i32 = arith.constant 0 : i32
    %c0_i32_0 = arith.constant 0 : i32
    %c0_i32_1 = arith.constant 0 : i32
    %c0_i32_2 = arith.constant 0 : i32
    return %arg0, %c0_i32, %c0_i32_0, %c0_i32_1 : i32, i32, i32, i32
  }
  func.func @transform_1(%arg0: i32) -> (i32, i32) {
    %c0_i32 = arith.constant 0 : i32
    %c0_i32_0 = arith.constant 0 : i32
    %c0_i32_1 = arith.constant 0 : i32
    return %c0_i32, %c0_i32_0 : i32, i32
  }
  func.func @transform_2(%arg0: i32) -> (i32, i32) {
    %c0_i32 = arith.constant 0 : i32
    %c0_i32_0 = arith.constant 0 : i32
    %c0_i32_1 = arith.constant 0 : i32
    return %c0_i32, %c0_i32_0 : i32, i32
  }
  func.func @transform_3(%arg0: i32) -> (i32, i32) {
    %c0_i32 = arith.constant 0 : i32
    %c0_i32_0 = arith.constant 0 : i32
    %c0_i32_1 = arith.constant 0 : i32
    return %c0_i32, %c0_i32_0 : i32, i32
  }
  func.func @transform_4(%arg0: i32) -> (i32, i32) {
    %c0_i32 = arith.constant 0 : i32
    %c0_i32_0 = arith.constant 0 : i32
    %c0_i32_1 = arith.constant 0 : i32
    return %c0_i32, %c0_i32_0 : i32, i32
  }
  func.func @transform_5(%arg0: i32) -> (i32, i32, i32, i32) {
    %c0_i32 = arith.constant 0 : i32
    %c0_i32_0 = arith.constant 0 : i32
    %c0_i32_1 = arith.constant 0 : i32
    %c0_i32_2 = arith.constant 0 : i32
    return %arg0, %c0_i32, %c0_i32_0, %c0_i32_1 : i32, i32, i32, i32
  }
}

</mosaic_0001>

<llo_original>
// kernel: tpu_custom_call.1
$region0: #{tpu_custom_call.1}
  #allocation0 [shape = 'u32[]', space=smem, size = 0x4, offset = 0x4, fixed_abs, tag = 'smem constant byte address 0x4 - core index']
  #allocation1 [shape = 'u32[144,128]{1,0:T(1,128)}', space=vmem, size = 0x12000, scoped, tag = 'internal scratch']
  %s0 = inlined_call_operand.vmem [shape: f32[2,18,18,32], index: 0, kind: input, shape index: {}]
  %s1 = inlined_call_operand.vmem [shape: f32[9,32], index: 1, kind: input, shape index: {}]
  %s2 = inlined_call_operand.vmem [shape: f32[1,32], index: 2, kind: input, shape index: {}]
  %s3 = inlined_call_operand.vmem [shape: f32[32,64], index: 3, kind: input, shape index: {}]
  %s4 = inlined_call_operand.vmem [shape: f32[1,64], index: 4, kind: input, shape index: {}]
  %s5 = inlined_call_operand.hbm [shape: f32[2,16,16,64], index: 5, kind: output, shape index: {}]
  %s6 = sld [smem:[#allocation0]]
  $region53: #{tpu_custom_call.1} parent=0
    _
  %s8 = ssub.s32 1, %s6
  %s9 = scalar_select 0, %s8, %s6
  $region1: #{tpu_custom_call.1} parent=0
    #allocation2 [shape = 'u8[262144]{0}', space=vmem, size = 0x40000, scoped, tag = 'output window, operand 0']
    #allocation3 [shape = 's32[2]{0}', space=sflag, size = 0x8, scoped, tag = 'scoped memory for tpu_custom_call.1']
    %10 = vsyncpa [#allocation3], 0
    %s11 = scalar_lea.sflag [#allocation3], 1
    %12 = vsyncpa %s11, 0
    loop: start=0, step=1, limit=4
    $region2: #{tpu_custom_call.1} parent=1 // loop_pre_header
      _
    $region3: #{tpu_custom_call.1} parent=1 // loop_header
      %s14 = sphi 0, %s18
      %p15 = scmp.ge.s32.totalorder %s14, 4
      %s24 = sphi 0, %s26
      %s27 = sphi 0, %s24
      %s28 = sphi 0, %s27
      %s44 = sphi 0, %s28
      %s48 = sphi 0, %s48
      %s50 = sphi 0, %s48
      %s51 = sphi 0, %s50
      %s65 = sphi 0, %s51
      %s69 = sphi 0, %s69
      %s71 = sphi 0, %s69
      %s72 = sphi 0, %s71
      %s86 = sphi 0, %s72
      %s90 = sphi 0, %s90
      %s92 = sphi 0, %s90
      %s93 = sphi 0, %s92
      %s107 = sphi 0, %s93
      %s111 = sphi 0, %s111
      %s113 = sphi 0, %s111
      %s114 = sphi 0, %s113
      %s128 = sphi 0, %s114
      %s134 = sphi 0, %s136
      %s137 = sphi 0, %s134
      %s138 = sphi 0, %s137
      %s154 = sphi 0, %s138
    $region4: #{tpu_custom_call.1} parent=1 // loop_header_branch
      %17 = sbr.rel (%p15) target = $region8
    $region5: #{tpu_custom_call.1} parent=1 // loop_body
      %s19 = ssub.s32 %s14, 1
      %s20 = ssub.s32 %s14, 2
      %s21 = sadd.s32 %s14, 1
      %s22 = ssub.s32 %s14, %s21
      %p23 = scmp.eq.s32.totalorder %s22, 0
      %s25 = sadd.s32 %s24, 1
      %s26 = scalar_select %p23, %s24, %s25
      %p29 = pneg %p23
      %p30 = scmp.eq.s32.totalorder %s14, 1
      %p31 = por %p29, %p30
      %p32 = scmp.ne.s32.totalorder %s24, %s27
      %p33 = scmp.eq.s32.totalorder %s14, 0
      %p34 = por %p32, %p33
      %p35 = scmp.ne.s32.totalorder %s24, %s27
      %p36 = scmp.eq.s32.totalorder %s19, 1
      %p37 = por %p35, %p36
      %p38 = scmp.ne.s32.totalorder %s27, %s28
      %p39 = scmp.eq.s32.totalorder %s19, 0
      %p40 = por %p38, %p39
      %p41 = scmp.ne.s32.totalorder %s27, %s28
      %p42 = scmp.eq.s32.totalorder %s20, 1
      %p43 = por %p41, %p42
      %p45 = scmp.ne.s32.totalorder %s28, %s44
      %p46 = scmp.eq.s32.totalorder %s20, 0
      %p47 = por %p45, %p46
      %s49 = sadd.s32 %s48, 1
      %p52 = scmp.eq.s32.totalorder %s14, 1
      %p53 = scmp.ne.s32.totalorder %s48, %s50
      %p54 = scmp.eq.s32.totalorder %s14, 0
      %p55 = por %p53, %p54
      %p56 = scmp.ne.s32.totalorder %s48, %s50
      %p57 = scmp.eq.s32.totalorder %s19, 1
      %p58 = por %p56, %p57
      %p59 = scmp.ne.s32.totalorder %s50, %s51
      %p60 = scmp.eq.s32.totalorder %s19, 0
      %p61 = por %p59, %p60
      %p62 = scmp.ne.s32.totalorder %s50, %s51
      %p63 = scmp.eq.s32.totalorder %s20, 1
      %p64 = por %p62, %p63
      %p66 = scmp.ne.s32.totalorder %s51, %s65
      %p67 = scmp.eq.s32.totalorder %s20, 0
      %p68 = por %p66, %p67
      %s70 = sadd.s32 %s69, 1
      %p73 = scmp.eq.s32.totalorder %s14, 1
      %p74 = scmp.ne.s32.totalorder %s69, %s71
      %p75 = scmp.eq.s32.totalorder %s14, 0
      %p76 = por %p74, %p75
      %p77 = scmp.ne.s32.totalorder %s69, %s71
      %p78 = scmp.eq.s32.totalorder %s19, 1
      %p79 = por %p77, %p78
      %p80 = scmp.ne.s32.totalorder %s71, %s72
      %p81 = scmp.eq.s32.totalorder %s19, 0
      %p82 = por %p80, %p81
      %p83 = scmp.ne.s32.totalorder %s71, %s72
      %p84 = scmp.eq.s32.totalorder %s20, 1
      %p85 = por %p83, %p84
      %p87 = scmp.ne.s32.totalorder %s72, %s86
      %p88 = scmp.eq.s32.totalorder %s20, 0
      %p89 = por %p87, %p88
      %s91 = sadd.s32 %s90, 1
      %p94 = scmp.eq.s32.totalorder %s14, 1
      %p95 = scmp.ne.s32.totalorder %s90, %s92
      %p96 = scmp.eq.s32.totalorder %s14, 0
      %p97 = por %p95, %p96
      %p98 = scmp.ne.s32.totalorder %s90, %s92
      %p99 = scmp.eq.s32.totalorder %s19, 1
      %p100 = por %p98, %p99
      %p101 = scmp.ne.s32.totalorder %s92, %s93
      %p102 = scmp.eq.s32.totalorder %s19, 0
      %p103 = por %p101, %p102
      %p104 = scmp.ne.s32.totalorder %s92, %s93
      %p105 = scmp.eq.s32.totalorder %s20, 1
      %p106 = por %p104, %p105
      %p108 = scmp.ne.s32.totalorder %s93, %s107
      %p109 = scmp.eq.s32.totalorder %s20, 0
      %p110 = por %p108, %p109
      %s112 = sadd.s32 %s111, 1
      %p115 = scmp.eq.s32.totalorder %s14, 1
      %p116 = scmp.ne.s32.totalorder %s111, %s113
      %p117 = scmp.eq.s32.totalorder %s14, 0
      %p118 = por %p116, %p117
      %p119 = scmp.ne.s32.totalorder %s111, %s113
      %p120 = scmp.eq.s32.totalorder %s19, 1
      %p121 = por %p119, %p120
      %p122 = scmp.ne.s32.totalorder %s113, %s114
      %p123 = scmp.eq.s32.totalorder %s19, 0
      %p124 = por %p122, %p123
      %p125 = scmp.ne.s32.totalorder %s113, %s114
      %p126 = scmp.eq.s32.totalorder %s20, 1
      %p127 = por %p125, %p126
      %p129 = scmp.ne.s32.totalorder %s114, %s128
      %p130 = scmp.eq.s32.totalorder %s20, 0
      %p131 = por %p129, %p130
      %s132 = ssub.s32 %s14, %s21
      %p133 = scmp.eq.s32.totalorder %s132, 0
      %s135 = sadd.s32 %s134, 1
      %s136 = scalar_select %p133, %s134, %s135
      %p139 = pneg %p133
      %p140 = scmp.eq.s32.totalorder %s14, 1
      %p141 = por %p139, %p140
      %p142 = scmp.ne.s32.totalorder %s134, %s137
      %p143 = scmp.eq.s32.totalorder %s14, 0
      %p144 = por %p142, %p143
      %p145 = scmp.ne.s32.totalorder %s134, %s137
      %p146 = scmp.eq.s32.totalorder %s19, 1
      %p147 = por %p145, %p146
      %p148 = scmp.ne.s32.totalorder %s137, %s138
      %p149 = scmp.eq.s32.totalorder %s19, 0
      %p150 = por %p148, %p149
      %p151 = scmp.ne.s32.totalorder %s137, %s138
      %p152 = scmp.eq.s32.totalorder %s20, 1
      %p153 = por %p151, %p152
      %p155 = scmp.ne.s32.totalorder %s138, %s154
      %p156 = scmp.eq.s32.totalorder %s20, 0
      %p157 = por %p155, %p156
      %p158 = scmp.le.s32.totalorder 1, %s14
      %p159 = scmp.lt.s32.totalorder %s14, 3
      %p160 = pnand %p158, %p159
      %p161 = pneg %p160
      // Predicated region
      $region9: #{tpu_custom_call.1} parent=5 // pred_check
        _
      $region10: #{tpu_custom_call.1} parent=5 // pred_check_branch
        %163 = sbr.rel (%p160) target = $region12
      $region11: #{tpu_custom_call.1} parent=5 // pred_region
        %s164 = ssub.s32 %s14, 1
        // Predicated region
        $region13: #{tpu_custom_call.1} parent=11 // pred_check
          %p165 = pneg %p61
        $region14: #{tpu_custom_call.1} parent=11 // pred_check_branch
          %167 = sbr.rel (%p165) target = $region16
        $region15: #{tpu_custom_call.1} parent=11 // pred_region
          _
        $region16: #{tpu_custom_call.1} parent=11 // pred_fallthru
          _
        // Predicated region
        $region17: #{tpu_custom_call.1} parent=11 // pred_check
          %p168 = pneg %p82
        $region18: #{tpu_custom_call.1} parent=11 // pred_check_branch
          %170 = sbr.rel (%p168) target = $region20
        $region19: #{tpu_custom_call.1} parent=11 // pred_region
          _
        $region20: #{tpu_custom_call.1} parent=11 // pred_fallthru
          _
        // Predicated region
        $region21: #{tpu_custom_call.1} parent=11 // pred_check
          %p171 = pneg %p103
        $region22: #{tpu_custom_call.1} parent=11 // pred_check_branch
          %173 = sbr.rel (%p171) target = $region24
        $region23: #{tpu_custom_call.1} parent=11 // pred_region
          _
        $region24: #{tpu_custom_call.1} parent=11 // pred_fallthru
          _
        // Predicated region
        $region25: #{tpu_custom_call.1} parent=11 // pred_check
          %p174 = pneg %p124
        $region26: #{tpu_custom_call.1} parent=11 // pred_check_branch
          %176 = sbr.rel (%p174) target = $region28
        $region27: #{tpu_custom_call.1} parent=11 // pred_region
          _
        $region28: #{tpu_custom_call.1} parent=11 // pred_fallthru
          _
      $region12: #{tpu_custom_call.1} parent=5 // pred_fallthru
        _
      %p177 = scmp.lt.s32.totalorder %s14, 2
      // Predicated region
      $region29: #{tpu_custom_call.1} parent=5 // pred_check
        %p178 = pneg %p177
      $region30: #{tpu_custom_call.1} parent=5 // pred_check_branch
        %180 = sbr.rel (%p178) target = $region32
      $region31: #{tpu_custom_call.1} parent=5 // pred_region
        // Predicated region
        $region33: #{tpu_custom_call.1} parent=31 // pred_check
          %p181 = pneg %p34
        $region34: #{tpu_custom_call.1} parent=31 // pred_check_branch
          %183 = sbr.rel (%p181) target = $region36
        $region35: #{tpu_custom_call.1} parent=31 // pred_region
          %p184 = scmp.lt.s32.totalorder %s14, 1
          %s185 = scalar_select %p184, %s14, 1
          %s186 = smul.addr %s185, 54
          %s187 = smul.addr %s186, 8
          %s188 = scalar_lea.vmem %s0, %s187
        $region36: #{tpu_custom_call.1} parent=31 // pred_fallthru
          _
      $region32: #{tpu_custom_call.1} parent=5 // pred_fallthru
        _
      %p189 = scmp.le.s32.totalorder 1, %s14
      %p190 = scmp.lt.s32.totalorder %s14, 3
      %p191 = pnand %p189, %p190
      %p192 = pneg %p191
      // Predicated region
      $region37: #{tpu_custom_call.1} parent=5 // pred_check
        _
      $region38: #{tpu_custom_call.1} parent=5 // pred_check_branch
        %194 = sbr.rel (%p191) target = $region40
      $region39: #{tpu_custom_call.1} parent=5 // pred_region
        %s195 = ssub.s32 %s14, 1
        %p196 = scmp.lt.s32.totalorder %s19, 1
        %s197 = scalar_select %p196, %s19, 1
        %s198 = smul.addr %s197, 54
        %s199 = smul.addr %s198, 8
        %s200 = scalar_lea.vmem %s0, %s199
        %p201 = pneg %p40
        %p202 = pneg %p37
        %p203 = pneg %p61
        %p204 = pneg %p58
        %p205 = pneg %p82
        %p206 = pneg %p79
        %p207 = pneg %p103
        %p208 = pneg %p100
        %p209 = pneg %p124
        %p210 = pneg %p121
        %p211 = pneg %p150
        %p212 = pneg %p147
        %s213 = sand.u32 %s137, 1
        %s214 = scalar_lea.sflag [#allocation3], %s213
        %s215 = sand.u32 %s137, 1
        %s216 = smul.addr %s215, 256
        %s217 = scalar_lea.vmem [#allocation2], %s216
        %p218 = scmp.lt.s32.totalorder %s19, 1
        %s219 = scalar_select %p218, %s19, 1
        %s220 = smul.addr %s219, 54
        %s221 = smul.addr %s220, 8
        %s222 = scalar_lea.vmem %s0, %s221
        %v223 = vld [vmem:[%s222] sm:$0xff]
        %v224 = vld [vmem:[%s222 + $0x8] sm:$0xff]
        %v225 = vld [vmem:[%s222 + $0x10] sm:$0x3]
        %v226 = vld [vmem:[%s222 + $0x18] sm:$0xff]
        %v227 = vld [vmem:[%s222 + $0x20] sm:$0xff]
        %v228 = vld [vmem:[%s222 + $0x28] sm:$0x3]
        %v229 = vld [vmem:[%s222 + $0x30] sm:$0xff]
        %v230 = vld [vmem:[%s222 + $0x38] sm:$0xff]
        %v231 = vld [vmem:[%s222 + $0x40] sm:$0x3]
        %v232 = vld [vmem:[%s222 + $0x48] sm:$0xff]
        %v233 = vld [vmem:[%s222 + $0x50] sm:$0xff]
        %v234 = vld [vmem:[%s222 + $0x58] sm:$0x3]
        %v235 = vld [vmem:[%s222 + $0x60] sm:$0xff]
        %v236 = vld [vmem:[%s222 + $0x68] sm:$0xff]
        %v237 = vld [vmem:[%s222 + $0x70] sm:$0x3]
        %v238 = vld [vmem:[%s222 + $0x78] sm:$0xff]
        %v239 = vld [vmem:[%s222 + $0x80] sm:$0xff]
        %v240 = vld [vmem:[%s222 + $0x88] sm:$0x3]
        %v241 = vld [vmem:[%s222 + $0x90] sm:$0xff]
        %v242 = vld [vmem:[%s222 + $0x98] sm:$0xff]
        %v243 = vld [vmem:[%s222 + $0xa0] sm:$0x3]
        %v244 = vld [vmem:[%s222 + $0xa8] sm:$0xff]
        %v245 = vld [vmem:[%s222 + $0xb0] sm:$0xff]
        %v246 = vld [vmem:[%s222 + $0xb8] sm:$0x3]
        %v247 = vld [vmem:[%s222 + $0xc0] sm:$0xff]
        %v248 = vld [vmem:[%s222 + $0xc8] sm:$0xff]
        %v249 = vld [vmem:[%s222 + $0xd0] sm:$0x3]
        %v250 = vld [vmem:[%s222 + $0xd8] sm:$0xff]
        %v251 = vld [vmem:[%s222 + $0xe0] sm:$0xff]
        %v252 = vld [vmem:[%s222 + $0xe8] sm:$0x3]
        %v253 = vld [vmem:[%s222 + $0xf0] sm:$0xff]
        %v254 = vld [vmem:[%s222 + $0xf8] sm:$0xff]
        %v255 = vld [vmem:[%s222 + $0x100] sm:$0x3]
        %v256 = vld [vmem:[%s222 + $0x108] sm:$0xff]
        %v257 = vld [vmem:[%s222 + $0x110] sm:$0xff]
        %v258 = vld [vmem:[%s222 + $0x118] sm:$0x3]
        %v259 = vld [vmem:[%s222 + $0x120] sm:$0xff]
        %v260 = vld [vmem:[%s222 + $0x128] sm:$0xff]
        %v261 = vld [vmem:[%s222 + $0x130] sm:$0x3]
        %v262 = vld [vmem:[%s222 + $0x138] sm:$0xff]
        %v263 = vld [vmem:[%s222 + $0x140] sm:$0xff]
        %v264 = vld [vmem:[%s222 + $0x148] sm:$0x3]
        %v265 = vld [vmem:[%s222 + $0x150] sm:$0xff]
        %v266 = vld [vmem:[%s222 + $0x158] sm:$0xff]
        %v267 = vld [vmem:[%s222 + $0x160] sm:$0x3]
        %v268 = vld [vmem:[%s222 + $0x168] sm:$0xff]
        %v269 = vld [vmem:[%s222 + $0x170] sm:$0xff]
        %v270 = vld [vmem:[%s222 + $0x178] sm:$0x3]
        %v271 = vld [vmem:[%s222 + $0x180] sm:$0xff]
        %v272 = vld [vmem:[%s222 + $0x188] sm:$0xff]
        %v273 = vld [vmem:[%s222 + $0x190] sm:$0x3]
        %v274 = vld [vmem:[%s222 + $0x198] sm:$0xff]
        %v275 = vld [vmem:[%s222 + $0x1a0] sm:$0xff]
        %v276 = vld [vmem:[%s222 + $0x1a8] sm:$0x3]
        %v277 = vld [vmem:[%s1] sm:$0xff]
        %v278 = vld [vmem:[%s1 + $0x8] sm:$0x1]
        %v279 = vld [vmem:[%s2] sm:$0x1]
        %v281 = vlaneseq
        %v282 = vshrl.u32 %v281, 7
        %v283 = vsub.s32 0, %v282
        %v284 = vrot.slane %v279, %v283
        %v286 = vadd.f32 %v284, 0.0
        %v287 = vlaneseq
        %v288 = vshrl.u32 %v287, 7
        %v289 = vsub.s32 0, %v288
        %v290 = vrot.slane %v277, %v289
        %v291 = vmul.f32 %v223, %v290
        %v292 = vmul.f32 %v224, %v290
        %v293 = vmul.f32 %v226, %v290
        %v294 = vmul.f32 %v227, %v290
        %v295 = vmul.f32 %v229, %v290
        %v296 = vmul.f32 %v230, %v290
        %v297 = vmul.f32 %v232, %v290
        %v298 = vmul.f32 %v233, %v290
        %v299 = vmul.f32 %v235, %v290
        %v300 = vmul.f32 %v236, %v290
        %v301 = vmul.f32 %v238, %v290
        %v302 = vmul.f32 %v239, %v290
        %v303 = vmul.f32 %v241, %v290
        %v304 = vmul.f32 %v242, %v290
        %v305 = vmul.f32 %v244, %v290
        %v306 = vmul.f32 %v245, %v290
        %v307 = vmul.f32 %v247, %v290
        %v308 = vmul.f32 %v248, %v290
        %v309 = vmul.f32 %v250, %v290
        %v310 = vmul.f32 %v251, %v290
        %v311 = vmul.f32 %v253, %v290
        %v312 = vmul.f32 %v254, %v290
        %v313 = vmul.f32 %v256, %v290
        %v314 = vmul.f32 %v257, %v290
        %v315 = vmul.f32 %v259, %v290
        %v316 = vmul.f32 %v260, %v290
        %v317 = vmul.f32 %v262, %v290
        %v318 = vmul.f32 %v263, %v290
        %v319 = vmul.f32 %v265, %v290
        %v320 = vmul.f32 %v266, %v290
        %v321 = vmul.f32 %v268, %v290
        %v322 = vmul.f32 %v269, %v290
        %v323 = vadd.f32 %v286, %v291
        %v324 = vadd.f32 %v286, %v292
        %v325 = vadd.f32 %v286, %v293
        %v326 = vadd.f32 %v286, %v294
        %v327 = vadd.f32 %v286, %v295
        %v328 = vadd.f32 %v286, %v296
        %v329 = vadd.f32 %v286, %v297
        %v330 = vadd.f32 %v286, %v298
        %v331 = vadd.f32 %v286, %v299
        %v332 = vadd.f32 %v286, %v300
        %v333 = vadd.f32 %v286, %v301
        %v334 = vadd.f32 %v286, %v302
        %v335 = vadd.f32 %v286, %v303
        %v336 = vadd.f32 %v286, %v304
        %v337 = vadd.f32 %v286, %v305
        %v338 = vadd.f32 %v286, %v306
        %v339 = vadd.f32 %v286, %v307
        %v340 = vadd.f32 %v286, %v308
        %v341 = vadd.f32 %v286, %v309
        %v342 = vadd.f32 %v286, %v310
        %v343 = vadd.f32 %v286, %v311
        %v344 = vadd.f32 %v286, %v312
        %v345 = vadd.f32 %v286, %v313
        %v346 = vadd.f32 %v286, %v314
        %v347 = vadd.f32 %v286, %v315
        %v348 = vadd.f32 %v286, %v316
        %v349 = vadd.f32 %v286, %v317
        %v350 = vadd.f32 %v286, %v318
        %v351 = vadd.f32 %v286, %v319
        %v352 = vadd.f32 %v286, %v320
        %v353 = vadd.f32 %v286, %v321
        %v354 = vadd.f32 %v286, %v322
        %v355 = vlaneseq
        %v356 = vshrl.u32 %v355, 7
        %v357 = vsub.s32 1, %v356
        %v358 = vrot.slane %v277, %v357
        %v359 = vmul.f32 %v223, %v358
        %v360 = vmul.f32 %v224, %v358
        %v361 = vmul.f32 %v225, %v358
        %v362 = vmul.f32 %v226, %v358
        %v363 = vmul.f32 %v227, %v358
        %v364 = vmul.f32 %v228, %v358
        %v365 = vmul.f32 %v229, %v358
        %v366 = vmul.f32 %v230, %v358
        %v367 = vmul.f32 %v231, %v358
        %v368 = vmul.f32 %v232, %v358
        %v369 = vmul.f32 %v233, %v358
        %v370 = vmul.f32 %v234, %v358
        %v371 = vmul.f32 %v235, %v358
        %v372 = vmul.f32 %v236, %v358
        %v373 = vmul.f32 %v237, %v358
        %v374 = vmul.f32 %v238, %v358
        %v375 = vmul.f32 %v239, %v358
        %v376 = vmul.f32 %v240, %v358
        %v377 = vmul.f32 %v241, %v358
        %v378 = vmul.f32 %v242, %v358
        %v379 = vmul.f32 %v243, %v358
        %v380 = vmul.f32 %v244, %v358
        %v381 = vmul.f32 %v245, %v358
        %v382 = vmul.f32 %v246, %v358
        %v383 = vmul.f32 %v247, %v358
        %v384 = vmul.f32 %v248, %v358
        %v385 = vmul.f32 %v249, %v358
        %v386 = vmul.f32 %v250, %v358
        %v387 = vmul.f32 %v251, %v358
        %v388 = vmul.f32 %v252, %v358
        %v389 = vmul.f32 %v253, %v358
        %v390 = vmul.f32 %v254, %v358
        %v391 = vmul.f32 %v255, %v358
        %v392 = vmul.f32 %v256, %v358
        %v393 = vmul.f32 %v257, %v358
        %v394 = vmul.f32 %v258, %v358
        %v395 = vmul.f32 %v259, %v358
        %v396 = vmul.f32 %v260, %v358
        %v397 = vmul.f32 %v261, %v358
        %v398 = vmul.f32 %v262, %v358
        %v399 = vmul.f32 %v263, %v358
        %v400 = vmul.f32 %v264, %v358
        %v401 = vmul.f32 %v265, %v358
        %v402 = vmul.f32 %v266, %v358
        %v403 = vmul.f32 %v267, %v358
        %v404 = vmul.f32 %v268, %v358
        %v405 = vmul.f32 %v269, %v358
        %v406 = vmul.f32 %v270, %v358
        %vm455 = vcmask 1046528
        %v456 = vrot.slane %v359, 1
        %v457 = vrot.slane %v360, 1
        %v458 = vsel %vm455, %v456, %v457
        %v459 = vrot.slane %v361, 1
        %v460 = vsel %vm455, %v457, %v459
        %v461 = vrot.slane %v362, 1
        %v462 = vrot.slane %v363, 1
        %v463 = vsel %vm455, %v461, %v462
        %v464 = vrot.slane %v364, 1
        %v465 = vsel %vm455, %v462, %v464
        %v466 = vrot.slane %v365, 1
        %v467 = vrot.slane %v366, 1
        %v468 = vsel %vm455, %v466, %v467
        %v469 = vrot.slane %v367, 1
        %v470 = vsel %vm455, %v467, %v469
        %v471 = vrot.slane %v368, 1
        %v472 = vrot.slane %v369, 1
        %v473 = vsel %vm455, %v471, %v472
        %v474 = vrot.slane %v370, 1
        %v475 = vsel %vm455, %v472, %v474
        %v476 = vrot.slane %v371, 1
        %v477 = vrot.slane %v372, 1
        %v478 = vsel %vm455, %v476, %v477
        %v479 = vrot.slane %v373, 1
        %v480 = vsel %vm455, %v477, %v479
        %v481 = vrot.slane %v374, 1
        %v482 = vrot.slane %v375, 1
        %v483 = vsel %vm455, %v481, %v482
        %v484 = vrot.slane %v376, 1
        %v485 = vsel %vm455, %v482, %v484
        %v486 = vrot.slane %v377, 1
        %v487 = vrot.slane %v378, 1
        %v488 = vsel %vm455, %v486, %v487
        %v489 = vrot.slane %v379, 1
        %v490 = vsel %vm455, %v487, %v489
        %v491 = vrot.slane %v380, 1
        %v492 = vrot.slane %v381, 1
        %v493 = vsel %vm455, %v491, %v492
        %v494 = vrot.slane %v382, 1
        %v495 = vsel %vm455, %v492, %v494
        %v496 = vrot.slane %v383, 1
        %v497 = vrot.slane %v384, 1
        %v498 = vsel %vm455, %v496, %v497
        %v499 = vrot.slane %v385, 1
        %v500 = vsel %vm455, %v497, %v499
        %v501 = vrot.slane %v386, 1
        %v502 = vrot.slane %v387, 1
        %v503 = vsel %vm455, %v501, %v502
        %v504 = vrot.slane %v388, 1
        %v505 = vsel %vm455, %v502, %v504
        %v506 = vrot.slane %v389, 1
        %v507 = vrot.slane %v390, 1
        %v508 = vsel %vm455, %v506, %v507
        %v509 = vrot.slane %v391, 1
        %v510 = vsel %vm455, %v507, %v509
        %v511 = vrot.slane %v392, 1
        %v512 = vrot.slane %v393, 1
        %v513 = vsel %vm455, %v511, %v512
        %v514 = vrot.slane %v394, 1
        %v515 = vsel %vm455, %v512, %v514
        %v516 = vrot.slane %v395, 1
        %v517 = vrot.slane %v396, 1
        %v518 = vsel %vm455, %v516, %v517
        %v519 = vrot.slane %v397, 1
        %v520 = vsel %vm455, %v517, %v519
        %v521 = vrot.slane %v398, 1
        %v522 = vrot.slane %v399, 1
        %v523 = vsel %vm455, %v521, %v522
        %v524 = vrot.slane %v400, 1
        %v525 = vsel %vm455, %v522, %v524
        %v526 = vrot.slane %v401, 1
        %v527 = vrot.slane %v402, 1
        %v528 = vsel %vm455, %v526, %v527
        %v529 = vrot.slane %v403, 1
        %v530 = vsel %vm455, %v527, %v529
        %v531 = vrot.slane %v404, 1
        %v532 = vrot.slane %v405, 1
        %v533 = vsel %vm455, %v531, %v532
        %v534 = vrot.slane %v406, 1
        %v535 = vsel %vm455, %v532, %v534
        %v568 = vadd.f32 %v323, %v458
        %v569 = vadd.f32 %v324, %v460
        %v570 = vadd.f32 %v325, %v463
        %v571 = vadd.f32 %v326, %v465
        %v572 = vadd.f32 %v327, %v468
        %v573 = vadd.f32 %v328, %v470
        %v574 = vadd.f32 %v329, %v473
        %v575 = vadd.f32 %v330, %v475
        %v576 = vadd.f32 %v331, %v478
        %v577 = vadd.f32 %v332, %v480
        %v578 = vadd.f32 %v333, %v483
        %v579 = vadd.f32 %v334, %v485
        %v580 = vadd.f32 %v335, %v488
        %v581 = vadd.f32 %v336, %v490
        %v582 = vadd.f32 %v337, %v493
        %v583 = vadd.f32 %v338, %v495
        %v584 = vadd.f32 %v339, %v498
        %v585 = vadd.f32 %v340, %v500
        %v586 = vadd.f32 %v341, %v503
        %v587 = vadd.f32 %v342, %v505
        %v588 = vadd.f32 %v343, %v508
        %v589 = vadd.f32 %v344, %v510
        %v590 = vadd.f32 %v345, %v513
        %v591 = vadd.f32 %v346, %v515
        %v592 = vadd.f32 %v347, %v518
        %v593 = vadd.f32 %v348, %v520
        %v594 = vadd.f32 %v349, %v523
        %v595 = vadd.f32 %v350, %v525
        %v596 = vadd.f32 %v351, %v528
        %v597 = vadd.f32 %v352, %v530
        %v598 = vadd.f32 %v353, %v533
        %v599 = vadd.f32 %v354, %v535
        %v600 = vlaneseq
        %v601 = vshrl.u32 %v600, 7
        %v602 = vsub.s32 2, %v601
        %v603 = vrot.slane %v277, %v602
        %v604 = vmul.f32 %v223, %v603
        %v605 = vmul.f32 %v224, %v603
        %v606 = vmul.f32 %v225, %v603
        %v607 = vmul.f32 %v226, %v603
        %v608 = vmul.f32 %v227, %v603
        %v609 = vmul.f32 %v228, %v603
        %v610 = vmul.f32 %v229, %v603
        %v611 = vmul.f32 %v230, %v603
        %v612 = vmul.f32 %v231, %v603
        %v613 = vmul.f32 %v232, %v603
        %v614 = vmul.f32 %v233, %v603
        %v615 = vmul.f32 %v234, %v603
        %v616 = vmul.f32 %v235, %v603
        %v617 = vmul.f32 %v236, %v603
        %v618 = vmul.f32 %v237, %v603
        %v619 = vmul.f32 %v238, %v603
        %v620 = vmul.f32 %v239, %v603
        %v621 = vmul.f32 %v240, %v603
        %v622 = vmul.f32 %v241, %v603
        %v623 = vmul.f32 %v242, %v603
        %v624 = vmul.f32 %v243, %v603
        %v625 = vmul.f32 %v244, %v603
        %v626 = vmul.f32 %v245, %v603
        %v627 = vmul.f32 %v246, %v603
        %v628 = vmul.f32 %v247, %v603
        %v629 = vmul.f32 %v248, %v603
        %v630 = vmul.f32 %v249, %v603
        %v631 = vmul.f32 %v250, %v603
        %v632 = vmul.f32 %v251, %v603
        %v633 = vmul.f32 %v252, %v603
        %v634 = vmul.f32 %v253, %v603
        %v635 = vmul.f32 %v254, %v603
        %v636 = vmul.f32 %v255, %v603
        %v637 = vmul.f32 %v256, %v603
        %v638 = vmul.f32 %v257, %v603
        %v639 = vmul.f32 %v258, %v603
        %v640 = vmul.f32 %v259, %v603
        %v641 = vmul.f32 %v260, %v603
        %v642 = vmul.f32 %v261, %v603
        %v643 = vmul.f32 %v262, %v603
        %v644 = vmul.f32 %v263, %v603
        %v645 = vmul.f32 %v264, %v603
        %v646 = vmul.f32 %v265, %v603
        %v647 = vmul.f32 %v266, %v603
        %v648 = vmul.f32 %v267, %v603
        %v649 = vmul.f32 %v268, %v603
        %v650 = vmul.f32 %v269, %v603
        %v651 = vmul.f32 %v270, %v603
        %vm700 = vcmask 1045504
        %v701 = vrot.slane %v604, 2
        %v702 = vrot.slane %v605, 2
        %v703 = vsel %vm700, %v701, %v702
        %v704 = vrot.slane %v606, 2
        %v705 = vsel %vm700, %v702, %v704
        %v706 = vrot.slane %v607, 2
        %v707 = vrot.slane %v608, 2
        %v708 = vsel %vm700, %v706, %v707
        %v709 = vrot.slane %v609, 2
        %v710 = vsel %vm700, %v707, %v709
        %v711 = vrot.slane %v610, 2
        %v712 = vrot.slane %v611, 2
        %v713 = vsel %vm700, %v711, %v712
        %v714 = vrot.slane %v612, 2
        %v715 = vsel %vm700, %v712, %v714
        %v716 = vrot.slane %v613, 2
        %v717 = vrot.slane %v614, 2
        %v718 = vsel %vm700, %v716, %v717
        %v719 = vrot.slane %v615, 2
        %v720 = vsel %vm700, %v717, %v719
        %v721 = vrot.slane %v616, 2
        %v722 = vrot.slane %v617, 2
        %v723 = vsel %vm700, %v721, %v722
        %v724 = vrot.slane %v618, 2
        %v725 = vsel %vm700, %v722, %v724
        %v726 = vrot.slane %v619, 2
        %v727 = vrot.slane %v620, 2
        %v728 = vsel %vm700, %v726, %v727
        %v729 = vrot.slane %v621, 2
        %v730 = vsel %vm700, %v727, %v729
        %v731 = vrot.slane %v622, 2
        %v732 = vrot.slane %v623, 2
        %v733 = vsel %vm700, %v731, %v732
        %v734 = vrot.slane %v624, 2
        %v735 = vsel %vm700, %v732, %v734
        %v736 = vrot.slane %v625, 2
        %v737 = vrot.slane %v626, 2
        %v738 = vsel %vm700, %v736, %v737
        %v739 = vrot.slane %v627, 2
        %v740 = vsel %vm700, %v737, %v739
        %v741 = vrot.slane %v628, 2
        %v742 = vrot.slane %v629, 2
        %v743 = vsel %vm700, %v741, %v742
        %v744 = vrot.slane %v630, 2
        %v745 = vsel %vm700, %v742, %v744
        %v746 = vrot.slane %v631, 2
        %v747 = vrot.slane %v632, 2
        %v748 = vsel %vm700, %v746, %v747
        %v749 = vrot.slane %v633, 2
        %v750 = vsel %vm700, %v747, %v749
        %v751 = vrot.slane %v634, 2
        %v752 = vrot.slane %v635, 2
        %v753 = vsel %vm700, %v751, %v752
        %v754 = vrot.slane %v636, 2
        %v755 = vsel %vm700, %v752, %v754
        %v756 = vrot.slane %v637, 2
        %v757 = vrot.slane %v638, 2
        %v758 = vsel %vm700, %v756, %v757
        %v759 = vrot.slane %v639, 2
        %v760 = vsel %vm700, %v757, %v759
        %v761 = vrot.slane %v640, 2
        %v762 = vrot.slane %v641, 2
        %v763 = vsel %vm700, %v761, %v762
        %v764 = vrot.slane %v642, 2
        %v765 = vsel %vm700, %v762, %v764
        %v766 = vrot.slane %v643, 2
        %v767 = vrot.slane %v644, 2
        %v768 = vsel %vm700, %v766, %v767
        %v769 = vrot.slane %v645, 2
        %v770 = vsel %vm700, %v767, %v769
        %v771 = vrot.slane %v646, 2
        %v772 = vrot.slane %v647, 2
        %v773 = vsel %vm700, %v771, %v772
        %v774 = vrot.slane %v648, 2
        %v775 = vsel %vm700, %v772, %v774
        %v776 = vrot.slane %v649, 2
        %v777 = vrot.slane %v650, 2
        %v778 = vsel %vm700, %v776, %v777
        %v779 = vrot.slane %v651, 2
        %v780 = vsel %vm700, %v777, %v779
        %v813 = vadd.f32 %v568, %v703
        %v814 = vadd.f32 %v569, %v705
        %v815 = vadd.f32 %v570, %v708
        %v816 = vadd.f32 %v571, %v710
        %v817 = vadd.f32 %v572, %v713
        %v818 = vadd.f32 %v573, %v715
        %v819 = vadd.f32 %v574, %v718
        %v820 = vadd.f32 %v575, %v720
        %v821 = vadd.f32 %v576, %v723
        %v822 = vadd.f32 %v577, %v725
        %v823 = vadd.f32 %v578, %v728
        %v824 = vadd.f32 %v579, %v730
        %v825 = vadd.f32 %v580, %v733
        %v826 = vadd.f32 %v581, %v735
        %v827 = vadd.f32 %v582, %v738
        %v828 = vadd.f32 %v583, %v740
        %v829 = vadd.f32 %v584, %v743
        %v830 = vadd.f32 %v585, %v745
        %v831 = vadd.f32 %v586, %v748
        %v832 = vadd.f32 %v587, %v750
        %v833 = vadd.f32 %v588, %v753
        %v834 = vadd.f32 %v589, %v755
        %v835 = vadd.f32 %v590, %v758
        %v836 = vadd.f32 %v591, %v760
        %v837 = vadd.f32 %v592, %v763
        %v838 = vadd.f32 %v593, %v765
        %v839 = vadd.f32 %v594, %v768
        %v840 = vadd.f32 %v595, %v770
        %v841 = vadd.f32 %v596, %v773
        %v842 = vadd.f32 %v597, %v775
        %v843 = vadd.f32 %v598, %v778
        %v844 = vadd.f32 %v599, %v780
        %v845 = vlaneseq
        %v846 = vshrl.u32 %v845, 7
        %v847 = vsub.s32 3, %v846
        %v848 = vrot.slane %v277, %v847
        %v849 = vmul.f32 %v226, %v848
        %v850 = vmul.f32 %v227, %v848
        %v851 = vmul.f32 %v229, %v848
        %v852 = vmul.f32 %v230, %v848
        %v853 = vmul.f32 %v232, %v848
        %v854 = vmul.f32 %v233, %v848
        %v855 = vmul.f32 %v235, %v848
        %v856 = vmul.f32 %v236, %v848
        %v857 = vmul.f32 %v238, %v848
        %v858 = vmul.f32 %v239, %v848
        %v859 = vmul.f32 %v241, %v848
        %v860 = vmul.f32 %v242, %v848
        %v861 = vmul.f32 %v244, %v848
        %v862 = vmul.f32 %v245, %v848
        %v863 = vmul.f32 %v247, %v848
        %v864 = vmul.f32 %v248, %v848
        %v865 = vmul.f32 %v250, %v848
        %v866 = vmul.f32 %v251, %v848
        %v867 = vmul.f32 %v253, %v848
        %v868 = vmul.f32 %v254, %v848
        %v869 = vmul.f32 %v256, %v848
        %v870 = vmul.f32 %v257, %v848
        %v871 = vmul.f32 %v259, %v848
        %v872 = vmul.f32 %v260, %v848
        %v873 = vmul.f32 %v262, %v848
        %v874 = vmul.f32 %v263, %v848
        %v875 = vmul.f32 %v265, %v848
        %v876 = vmul.f32 %v266, %v848
        %v877 = vmul.f32 %v268, %v848
        %v878 = vmul.f32 %v269, %v848
        %v879 = vmul.f32 %v271, %v848
        %v880 = vmul.f32 %v272, %v848
        %v881 = vadd.f32 %v813, %v849
        %v882 = vadd.f32 %v814, %v850
        %v883 = vadd.f32 %v815, %v851
        %v884 = vadd.f32 %v816, %v852
        %v885 = vadd.f32 %v817, %v853
        %v886 = vadd.f32 %v818, %v854
        %v887 = vadd.f32 %v819, %v855
        %v888 = vadd.f32 %v820, %v856
        %v889 = vadd.f32 %v821, %v857
        %v890 = vadd.f32 %v822, %v858
        %v891 = vadd.f32 %v823, %v859
        %v892 = vadd.f32 %v824, %v860
        %v893 = vadd.f32 %v825, %v861
        %v894 = vadd.f32 %v826, %v862
        %v895 = vadd.f32 %v827, %v863
        %v896 = vadd.f32 %v828, %v864
        %v897 = vadd.f32 %v829, %v865
        %v898 = vadd.f32 %v830, %v866
        %v899 = vadd.f32 %v831, %v867
        %v900 = vadd.f32 %v832, %v868
        %v901 = vadd.f32 %v833, %v869
        %v902 = vadd.f32 %v834, %v870
        %v903 = vadd.f32 %v835, %v871
        %v904 = vadd.f32 %v836, %v872
        %v905 = vadd.f32 %v837, %v873
        %v906 = vadd.f32 %v838, %v874
        %v907 = vadd.f32 %v839, %v875
        %v908 = vadd.f32 %v840, %v876
        %v909 = vadd.f32 %v841, %v877
        %v910 = vadd.f32 %v842, %v878
        %v911 = vadd.f32 %v843, %v879
        %v912 = vadd.f32 %v844, %v880
        %v913 = vlaneseq
        %v914 = vshrl.u32 %v913, 7
        %v915 = vsub.s32 4, %v914
        %v916 = vrot.slane %v277, %v915
        %v917 = vmul.f32 %v226, %v916
        %v918 = vmul.f32 %v227, %v916
        %v919 = vmul.f32 %v228, %v916
        %v920 = vmul.f32 %v229, %v916
        %v921 = vmul.f32 %v230, %v916
        %v922 = vmul.f32 %v231, %v916
        %v923 = vmul.f32 %v232, %v916
        %v924 = vmul.f32 %v233, %v916
        %v925 = vmul.f32 %v234, %v916
        %v926 = vmul.f32 %v235, %v916
        %v927 = vmul.f32 %v236, %v916
        %v928 = vmul.f32 %v237, %v916
        %v929 = vmul.f32 %v238, %v916
        %v930 = vmul.f32 %v239, %v916
        %v931 = vmul.f32 %v240, %v916
        %v932 = vmul.f32 %v241, %v916
        %v933 = vmul.f32 %v242, %v916
        %v934 = vmul.f32 %v243, %v916
        %v935 = vmul.f32 %v244, %v916
        %v936 = vmul.f32 %v245, %v916
        %v937 = vmul.f32 %v246, %v916
        %v938 = vmul.f32 %v247, %v916
        %v939 = vmul.f32 %v248, %v916
        %v940 = vmul.f32 %v249, %v916
        %v941 = vmul.f32 %v250, %v916
        %v942 = vmul.f32 %v251, %v916
        %v943 = vmul.f32 %v252, %v916
        %v944 = vmul.f32 %v253, %v916
        %v945 = vmul.f32 %v254, %v916
        %v946 = vmul.f32 %v255, %v916
        %v947 = vmul.f32 %v256, %v916
        %v948 = vmul.f32 %v257, %v916
        %v949 = vmul.f32 %v258, %v916
        %v950 = vmul.f32 %v259, %v916
        %v951 = vmul.f32 %v260, %v916
        %v952 = vmul.f32 %v261, %v916
        %v953 = vmul.f32 %v262, %v916
        %v954 = vmul.f32 %v263, %v916
        %v955 = vmul.f32 %v264, %v916
        %v956 = vmul.f32 %v265, %v916
        %v957 = vmul.f32 %v266, %v916
        %v958 = vmul.f32 %v267, %v916
        %v959 = vmul.f32 %v268, %v916
        %v960 = vmul.f32 %v269, %v916
        %v961 = vmul.f32 %v270, %v916
        %v962 = vmul.f32 %v271, %v916
        %v963 = vmul.f32 %v272, %v916
        %v964 = vmul.f32 %v273, %v916
        %v1013 = vrot.slane %v917, 1
        %v1014 = vrot.slane %v918, 1
        %v1015 = vsel %vm455, %v1013, %v1014
        %v1016 = vrot.slane %v919, 1
        %v1017 = vsel %vm455, %v1014, %v1016
        %v1018 = vrot.slane %v920, 1
        %v1019 = vrot.slane %v921, 1
        %v1020 = vsel %vm455, %v1018, %v1019
        %v1021 = vrot.slane %v922, 1
        %v1022 = vsel %vm455, %v1019, %v1021
        %v1023 = vrot.slane %v923, 1
        %v1024 = vrot.slane %v924, 1
        %v1025 = vsel %vm455, %v1023, %v1024
        %v1026 = vrot.slane %v925, 1
        %v1027 = vsel %vm455, %v1024, %v1026
        %v1028 = vrot.slane %v926, 1
        %v1029 = vrot.slane %v927, 1
        %v1030 = vsel %vm455, %v1028, %v1029
        %v1031 = vrot.slane %v928, 1
        %v1032 = vsel %vm455, %v1029, %v1031
        %v1033 = vrot.slane %v929, 1
        %v1034 = vrot.slane %v930, 1
        %v1035 = vsel %vm455, %v1033, %v1034
        %v1036 = vrot.slane %v931, 1
        %v1037 = vsel %vm455, %v1034, %v1036
        %v1038 = vrot.slane %v932, 1
        %v1039 = vrot.slane %v933, 1
        %v1040 = vsel %vm455, %v1038, %v1039
        %v1041 = vrot.slane %v934, 1
        %v1042 = vsel %vm455, %v1039, %v1041
        %v1043 = vrot.slane %v935, 1
        %v1044 = vrot.slane %v936, 1
        %v1045 = vsel %vm455, %v1043, %v1044
        %v1046 = vrot.slane %v937, 1
        %v1047 = vsel %vm455, %v1044, %v1046
        %v1048 = vrot.slane %v938, 1
        %v1049 = vrot.slane %v939, 1
        %v1050 = vsel %vm455, %v1048, %v1049
        %v1051 = vrot.slane %v940, 1
        %v1052 = vsel %vm455, %v1049, %v1051
        %v1053 = vrot.slane %v941, 1
        %v1054 = vrot.slane %v942, 1
        %v1055 = vsel %vm455, %v1053, %v1054
        %v1056 = vrot.slane %v943, 1
        %v1057 = vsel %vm455, %v1054, %v1056
        %v1058 = vrot.slane %v944, 1
        %v1059 = vrot.slane %v945, 1
        %v1060 = vsel %vm455, %v1058, %v1059
        %v1061 = vrot.slane %v946, 1
        %v1062 = vsel %vm455, %v1059, %v1061
        %v1063 = vrot.slane %v947, 1
        %v1064 = vrot.slane %v948, 1
        %v1065 = vsel %vm455, %v1063, %v1064
        %v1066 = vrot.slane %v949, 1
        %v1067 = vsel %vm455, %v1064, %v1066
        %v1068 = vrot.slane %v950, 1
        %v1069 = vrot.slane %v951, 1
        %v1070 = vsel %vm455, %v1068, %v1069
        %v1071 = vrot.slane %v952, 1
        %v1072 = vsel %vm455, %v1069, %v1071
        %v1073 = vrot.slane %v953, 1
        %v1074 = vrot.slane %v954, 1
        %v1075 = vsel %vm455, %v1073, %v1074
        %v1076 = vrot.slane %v955, 1
        %v1077 = vsel %vm455, %v1074, %v1076
        %v1078 = vrot.slane %v956, 1
        %v1079 = vrot.slane %v957, 1
        %v1080 = vsel %vm455, %v1078, %v1079
        %v1081 = vrot.slane %v958, 1
        %v1082 = vsel %vm455, %v1079, %v1081
        %v1083 = vrot.slane %v959, 1
        %v1084 = vrot.slane %v960, 1
        %v1085 = vsel %vm455, %v1083, %v1084
        %v1086 = vrot.slane %v961, 1
        %v1087 = vsel %vm455, %v1084, %v1086
        %v1088 = vrot.slane %v962, 1
        %v1089 = vrot.slane %v963, 1
        %v1090 = vsel %vm455, %v1088, %v1089
        %v1091 = vrot.slane %v964, 1
        %v1092 = vsel %vm455, %v1089, %v1091
        %v1125 = vadd.f32 %v881, %v1015
        %v1126 = vadd.f32 %v882, %v1017
        %v1127 = vadd.f32 %v883, %v1020
        %v1128 = vadd.f32 %v884, %v1022
        %v1129 = vadd.f32 %v885, %v1025
        %v1130 = vadd.f32 %v886, %v1027
        %v1131 = vadd.f32 %v887, %v1030
        %v1132 = vadd.f32 %v888, %v1032
        %v1133 = vadd.f32 %v889, %v1035
        %v1134 = vadd.f32 %v890, %v1037
        %v1135 = vadd.f32 %v891, %v1040
        %v1136 = vadd.f32 %v892, %v1042
        %v1137 = vadd.f32 %v893, %v1045
        %v1138 = vadd.f32 %v894, %v1047
        %v1139 = vadd.f32 %v895, %v1050
        %v1140 = vadd.f32 %v896, %v1052
        %v1141 = vadd.f32 %v897, %v1055
        %v1142 = vadd.f32 %v898, %v1057
        %v1143 = vadd.f32 %v899, %v1060
        %v1144 = vadd.f32 %v900, %v1062
        %v1145 = vadd.f32 %v901, %v1065
        %v1146 = vadd.f32 %v902, %v1067
        %v1147 = vadd.f32 %v903, %v1070
        %v1148 = vadd.f32 %v904, %v1072
        %v1149 = vadd.f32 %v905, %v1075
        %v1150 = vadd.f32 %v906, %v1077
        %v1151 = vadd.f32 %v907, %v1080
        %v1152 = vadd.f32 %v908, %v1082
        %v1153 = vadd.f32 %v909, %v1085
        %v1154 = vadd.f32 %v910, %v1087
        %v1155 = vadd.f32 %v911, %v1090
        %v1156 = vadd.f32 %v912, %v1092
        %v1157 = vlaneseq
        %v1158 = vshrl.u32 %v1157, 7
        %v1159 = vsub.s32 5, %v1158
        %v1160 = vrot.slane %v277, %v1159
        %v1161 = vmul.f32 %v226, %v1160
        %v1162 = vmul.f32 %v227, %v1160
        %v1163 = vmul.f32 %v228, %v1160
        %v1164 = vmul.f32 %v229, %v1160
        %v1165 = vmul.f32 %v230, %v1160
        %v1166 = vmul.f32 %v231, %v1160
        %v1167 = vmul.f32 %v232, %v1160
        %v1168 = vmul.f32 %v233, %v1160
        %v1169 = vmul.f32 %v234, %v1160
        %v1170 = vmul.f32 %v235, %v1160
        %v1171 = vmul.f32 %v236, %v1160
        %v1172 = vmul.f32 %v237, %v1160
        %v1173 = vmul.f32 %v238, %v1160
        %v1174 = vmul.f32 %v239, %v1160
        %v1175 = vmul.f32 %v240, %v1160
        %v1176 = vmul.f32 %v241, %v1160
        %v1177 = vmul.f32 %v242, %v1160
        %v1178 = vmul.f32 %v243, %v1160
        %v1179 = vmul.f32 %v244, %v1160
        %v1180 = vmul.f32 %v245, %v1160
        %v1181 = vmul.f32 %v246, %v1160
        %v1182 = vmul.f32 %v247, %v1160
        %v1183 = vmul.f32 %v248, %v1160
        %v1184 = vmul.f32 %v249, %v1160
        %v1185 = vmul.f32 %v250, %v1160
        %v1186 = vmul.f32 %v251, %v1160
        %v1187 = vmul.f32 %v252, %v1160
        %v1188 = vmul.f32 %v253, %v1160
        %v1189 = vmul.f32 %v254, %v1160
        %v1190 = vmul.f32 %v255, %v1160
        %v1191 = vmul.f32 %v256, %v1160
        %v1192 = vmul.f32 %v257, %v1160
        %v1193 = vmul.f32 %v258, %v1160
        %v1194 = vmul.f32 %v259, %v1160
        %v1195 = vmul.f32 %v260, %v1160
        %v1196 = vmul.f32 %v261, %v1160
        %v1197 = vmul.f32 %v262, %v1160
        %v1198 = vmul.f32 %v263, %v1160
        %v1199 = vmul.f32 %v264, %v1160
        %v1200 = vmul.f32 %v265, %v1160
        %v1201 = vmul.f32 %v266, %v1160
        %v1202 = vmul.f32 %v267, %v1160
        %v1203 = vmul.f32 %v268, %v1160
        %v1204 = vmul.f32 %v269, %v1160
        %v1205 = vmul.f32 %v270, %v1160
        %v1206 = vmul.f32 %v271, %v1160
        %v1207 = vmul.f32 %v272, %v1160
        %v1208 = vmul.f32 %v273, %v1160
        %v1257 = vrot.slane %v1161, 2
        %v1258 = vrot.slane %v1162, 2
        %v1259 = vsel %vm700, %v1257, %v1258
        %v1260 = vrot.slane %v1163, 2
        %v1261 = vsel %vm700, %v1258, %v1260
        %v1262 = vrot.slane %v1164, 2
        %v1263 = vrot.slane %v1165, 2
        %v1264 = vsel %vm700, %v1262, %v1263
        %v1265 = vrot.slane %v1166, 2
        %v1266 = vsel %vm700, %v1263, %v1265
        %v1267 = vrot.slane %v1167, 2
        %v1268 = vrot.slane %v1168, 2
        %v1269 = vsel %vm700, %v1267, %v1268
        %v1270 = vrot.slane %v1169, 2
        %v1271 = vsel %vm700, %v1268, %v1270
        %v1272 = vrot.slane %v1170, 2
        %v1273 = vrot.slane %v1171, 2
        %v1274 = vsel %vm700, %v1272, %v1273
        %v1275 = vrot.slane %v1172, 2
        %v1276 = vsel %vm700, %v1273, %v1275
        %v1277 = vrot.slane %v1173, 2
        %v1278 = vrot.slane %v1174, 2
        %v1279 = vsel %vm700, %v1277, %v1278
        %v1280 = vrot.slane %v1175, 2
        %v1281 = vsel %vm700, %v1278, %v1280
        %v1282 = vrot.slane %v1176, 2
        %v1283 = vrot.slane %v1177, 2
        %v1284 = vsel %vm700, %v1282, %v1283
        %v1285 = vrot.slane %v1178, 2
        %v1286 = vsel %vm700, %v1283, %v1285
        %v1287 = vrot.slane %v1179, 2
        %v1288 = vrot.slane %v1180, 2
        %v1289 = vsel %vm700, %v1287, %v1288
        %v1290 = vrot.slane %v1181, 2
        %v1291 = vsel %vm700, %v1288, %v1290
        %v1292 = vrot.slane %v1182, 2
        %v1293 = vrot.slane %v1183, 2
        %v1294 = vsel %vm700, %v1292, %v1293
        %v1295 = vrot.slane %v1184, 2
        %v1296 = vsel %vm700, %v1293, %v1295
        %v1297 = vrot.slane %v1185, 2
        %v1298 = vrot.slane %v1186, 2
        %v1299 = vsel %vm700, %v1297, %v1298
        %v1300 = vrot.slane %v1187, 2
        %v1301 = vsel %vm700, %v1298, %v1300
        %v1302 = vrot.slane %v1188, 2
        %v1303 = vrot.slane %v1189, 2
        %v1304 = vsel %vm700, %v1302, %v1303
        %v1305 = vrot.slane %v1190, 2
        %v1306 = vsel %vm700, %v1303, %v1305
        %v1307 = vrot.slane %v1191, 2
        %v1308 = vrot.slane %v1192, 2
        %v1309 = vsel %vm700, %v1307, %v1308
        %v1310 = vrot.slane %v1193, 2
        %v1311 = vsel %vm700, %v1308, %v1310
        %v1312 = vrot.slane %v1194, 2
        %v1313 = vrot.slane %v1195, 2
        %v1314 = vsel %vm700, %v1312, %v1313
        %v1315 = vrot.slane %v1196, 2
        %v1316 = vsel %vm700, %v1313, %v1315
        %v1317 = vrot.slane %v1197, 2
        %v1318 = vrot.slane %v1198, 2
        %v1319 = vsel %vm700, %v1317, %v1318
        %v1320 = vrot.slane %v1199, 2
        %v1321 = vsel %vm700, %v1318, %v1320
        %v1322 = vrot.slane %v1200, 2
        %v1323 = vrot.slane %v1201, 2
        %v1324 = vsel %vm700, %v1322, %v1323
        %v1325 = vrot.slane %v1202, 2
        %v1326 = vsel %vm700, %v1323, %v1325
        %v1327 = vrot.slane %v1203, 2
        %v1328 = vrot.slane %v1204, 2
        %v1329 = vsel %vm700, %v1327, %v1328
        %v1330 = vrot.slane %v1205, 2
        %v1331 = vsel %vm700, %v1328, %v1330
        %v1332 = vrot.slane %v1206, 2
        %v1333 = vrot.slane %v1207, 2
        %v1334 = vsel %vm700, %v1332, %v1333
        %v1335 = vrot.slane %v1208, 2
        %v1336 = vsel %vm700, %v1333, %v1335
        %v1369 = vadd.f32 %v1125, %v1259
        %v1370 = vadd.f32 %v1126, %v1261
        %v1371 = vadd.f32 %v1127, %v1264
        %v1372 = vadd.f32 %v1128, %v1266
        %v1373 = vadd.f32 %v1129, %v1269
        %v1374 = vadd.f32 %v1130, %v1271
        %v1375 = vadd.f32 %v1131, %v1274
        %v1376 = vadd.f32 %v1132, %v1276
        %v1377 = vadd.f32 %v1133, %v1279
        %v1378 = vadd.f32 %v1134, %v1281
        %v1379 = vadd.f32 %v1135, %v1284
        %v1380 = vadd.f32 %v1136, %v1286
        %v1381 = vadd.f32 %v1137, %v1289
        %v1382 = vadd.f32 %v1138, %v1291
        %v1383 = vadd.f32 %v1139, %v1294
        %v1384 = vadd.f32 %v1140, %v1296
        %v1385 = vadd.f32 %v1141, %v1299
        %v1386 = vadd.f32 %v1142, %v1301
        %v1387 = vadd.f32 %v1143, %v1304
        %v1388 = vadd.f32 %v1144, %v1306
        %v1389 = vadd.f32 %v1145, %v1309
        %v1390 = vadd.f32 %v1146, %v1311
        %v1391 = vadd.f32 %v1147, %v1314
        %v1392 = vadd.f32 %v1148, %v1316
        %v1393 = vadd.f32 %v1149, %v1319
        %v1394 = vadd.f32 %v1150, %v1321
        %v1395 = vadd.f32 %v1151, %v1324
        %v1396 = vadd.f32 %v1152, %v1326
        %v1397 = vadd.f32 %v1153, %v1329
        %v1398 = vadd.f32 %v1154, %v1331
        %v1399 = vadd.f32 %v1155, %v1334
        %v1400 = vadd.f32 %v1156, %v1336
        %v1401 = vlaneseq
        %v1402 = vshrl.u32 %v1401, 7
        %v1403 = vsub.s32 6, %v1402
        %v1404 = vrot.slane %v277, %v1403
        %v1405 = vmul.f32 %v229, %v1404
        %v1406 = vmul.f32 %v230, %v1404
        %v1407 = vmul.f32 %v232, %v1404
        %v1408 = vmul.f32 %v233, %v1404
        %v1409 = vmul.f32 %v235, %v1404
        %v1410 = vmul.f32 %v236, %v1404
        %v1411 = vmul.f32 %v238, %v1404
        %v1412 = vmul.f32 %v239, %v1404
        %v1413 = vmul.f32 %v241, %v1404
        %v1414 = vmul.f32 %v242, %v1404
        %v1415 = vmul.f32 %v244, %v1404
        %v1416 = vmul.f32 %v245, %v1404
        %v1417 = vmul.f32 %v247, %v1404
        %v1418 = vmul.f32 %v248, %v1404
        %v1419 = vmul.f32 %v250, %v1404
        %v1420 = vmul.f32 %v251, %v1404
        %v1421 = vmul.f32 %v253, %v1404
        %v1422 = vmul.f32 %v254, %v1404
        %v1423 = vmul.f32 %v256, %v1404
        %v1424 = vmul.f32 %v257, %v1404
        %v1425 = vmul.f32 %v259, %v1404
        %v1426 = vmul.f32 %v260, %v1404
        %v1427 = vmul.f32 %v262, %v1404
        %v1428 = vmul.f32 %v263, %v1404
        %v1429 = vmul.f32 %v265, %v1404
        %v1430 = vmul.f32 %v266, %v1404
        %v1431 = vmul.f32 %v268, %v1404
        %v1432 = vmul.f32 %v269, %v1404
        %v1433 = vmul.f32 %v271, %v1404
        %v1434 = vmul.f32 %v272, %v1404
        %v1435 = vmul.f32 %v274, %v1404
        %v1436 = vmul.f32 %v275, %v1404
        %v1437 = vadd.f32 %v1369, %v1405
        %v1438 = vadd.f32 %v1370, %v1406
        %v1439 = vadd.f32 %v1371, %v1407
        %v1440 = vadd.f32 %v1372, %v1408
        %v1441 = vadd.f32 %v1373, %v1409
        %v1442 = vadd.f32 %v1374, %v1410
        %v1443 = vadd.f32 %v1375, %v1411
        %v1444 = vadd.f32 %v1376, %v1412
        %v1445 = vadd.f32 %v1377, %v1413
        %v1446 = vadd.f32 %v1378, %v1414
        %v1447 = vadd.f32 %v1379, %v1415
        %v1448 = vadd.f32 %v1380, %v1416
        %v1449 = vadd.f32 %v1381, %v1417
        %v1450 = vadd.f32 %v1382, %v1418
        %v1451 = vadd.f32 %v1383, %v1419
        %v1452 = vadd.f32 %v1384, %v1420
        %v1453 = vadd.f32 %v1385, %v1421
        %v1454 = vadd.f32 %v1386, %v1422
        %v1455 = vadd.f32 %v1387, %v1423
        %v1456 = vadd.f32 %v1388, %v1424
        %v1457 = vadd.f32 %v1389, %v1425
        %v1458 = vadd.f32 %v1390, %v1426
        %v1459 = vadd.f32 %v1391, %v1427
        %v1460 = vadd.f32 %v1392, %v1428
        %v1461 = vadd.f32 %v1393, %v1429
        %v1462 = vadd.f32 %v1394, %v1430
        %v1463 = vadd.f32 %v1395, %v1431
        %v1464 = vadd.f32 %v1396, %v1432
        %v1465 = vadd.f32 %v1397, %v1433
        %v1466 = vadd.f32 %v1398, %v1434
        %v1467 = vadd.f32 %v1399, %v1435
        %v1468 = vadd.f32 %v1400, %v1436
        %v1469 = vlaneseq
        %v1470 = vshrl.u32 %v1469, 7
        %v1471 = vsub.s32 7, %v1470
        %v1472 = vrot.slane %v277, %v1471
        %v1473 = vmul.f32 %v229, %v1472
        %v1474 = vmul.f32 %v230, %v1472
        %v1475 = vmul.f32 %v231, %v1472
        %v1476 = vmul.f32 %v232, %v1472
        %v1477 = vmul.f32 %v233, %v1472
        %v1478 = vmul.f32 %v234, %v1472
        %v1479 = vmul.f32 %v235, %v1472
        %v1480 = vmul.f32 %v236, %v1472
        %v1481 = vmul.f32 %v237, %v1472
        %v1482 = vmul.f32 %v238, %v1472
        %v1483 = vmul.f32 %v239, %v1472
        %v1484 = vmul.f32 %v240, %v1472
        %v1485 = vmul.f32 %v241, %v1472
        %v1486 = vmul.f32 %v242, %v1472
        %v1487 = vmul.f32 %v243, %v1472
        %v1488 = vmul.f32 %v244, %v1472
        %v1489 = vmul.f32 %v245, %v1472
        %v1490 = vmul.f32 %v246, %v1472
        %v1491 = vmul.f32 %v247, %v1472
        %v1492 = vmul.f32 %v248, %v1472
        %v1493 = vmul.f32 %v249, %v1472
        %v1494 = vmul.f32 %v250, %v1472
        %v1495 = vmul.f32 %v251, %v1472
        %v1496 = vmul.f32 %v252, %v1472
        %v1497 = vmul.f32 %v253, %v1472
        %v1498 = vmul.f32 %v254, %v1472
        %v1499 = vmul.f32 %v255, %v1472
        %v1500 = vmul.f32 %v256, %v1472
        %v1501 = vmul.f32 %v257, %v1472
        %v1502 = vmul.f32 %v258, %v1472
        %v1503 = vmul.f32 %v259, %v1472
        %v1504 = vmul.f32 %v260, %v1472
        %v1505 = vmul.f32 %v261, %v1472
        %v1506 = vmul.f32 %v262, %v1472
        %v1507 = vmul.f32 %v263, %v1472
        %v1508 = vmul.f32 %v264, %v1472
        %v1509 = vmul.f32 %v265, %v1472
        %v1510 = vmul.f32 %v266, %v1472
        %v1511 = vmul.f32 %v267, %v1472
        %v1512 = vmul.f32 %v268, %v1472
        %v1513 = vmul.f32 %v269, %v1472
        %v1514 = vmul.f32 %v270, %v1472
        %v1515 = vmul.f32 %v271, %v1472
        %v1516 = vmul.f32 %v272, %v1472
        %v1517 = vmul.f32 %v273, %v1472
        %v1518 = vmul.f32 %v274, %v1472
        %v1519 = vmul.f32 %v275, %v1472
        %v1520 = vmul.f32 %v276, %v1472
        %v1569 = vrot.slane %v1473, 1
        %v1570 = vrot.slane %v1474, 1
        %v1571 = vsel %vm455, %v1569, %v1570
        %v1572 = vrot.slane %v1475, 1
        %v1573 = vsel %vm455, %v1570, %v1572
        %v1574 = vrot.slane %v1476, 1
        %v1575 = vrot.slane %v1477, 1
        %v1576 = vsel %vm455, %v1574, %v1575
        %v1577 = vrot.slane %v1478, 1
        %v1578 = vsel %vm455, %v1575, %v1577
        %v1579 = vrot.slane %v1479, 1
        %v1580 = vrot.slane %v1480, 1
        %v1581 = vsel %vm455, %v1579, %v1580
        %v1582 = vrot.slane %v1481, 1
        %v1583 = vsel %vm455, %v1580, %v1582
        %v1584 = vrot.slane %v1482, 1
        %v1585 = vrot.slane %v1483, 1
        %v1586 = vsel %vm455, %v1584, %v1585
        %v1587 = vrot.slane %v1484, 1
        %v1588 = vsel %vm455, %v1585, %v1587
        %v1589 = vrot.slane %v1485, 1
        %v1590 = vrot.slane %v1486, 1
        %v1591 = vsel %vm455, %v1589, %v1590
        %v1592 = vrot.slane %v1487, 1
        %v1593 = vsel %vm455, %v1590, %v1592
        %v1594 = vrot.slane %v1488, 1
        %v1595 = vrot.slane %v1489, 1
        %v1596 = vsel %vm455, %v1594, %v1595
        %v1597 = vrot.slane %v1490, 1
        %v1598 = vsel %vm455, %v1595, %v1597
        %v1599 = vrot.slane %v1491, 1
        %v1600 = vrot.slane %v1492, 1
        %v1601 = vsel %vm455, %v1599, %v1600
        %v1602 = vrot.slane %v1493, 1
        %v1603 = vsel %vm455, %v1600, %v1602
        %v1604 = vrot.slane %v1494, 1
        %v1605 = vrot.slane %v1495, 1
        %v1606 = vsel %vm455, %v1604, %v1605
        %v1607 = vrot.slane %v1496, 1
        %v1608 = vsel %vm455, %v1605, %v1607
        %v1609 = vrot.slane %v1497, 1
        %v1610 = vrot.slane %v1498, 1
        %v1611 = vsel %vm455, %v1609, %v1610
        %v1612 = vrot.slane %v1499, 1
        %v1613 = vsel %vm455, %v1610, %v1612
        %v1614 = vrot.slane %v1500, 1
        %v1615 = vrot.slane %v1501, 1
        %v1616 = vsel %vm455, %v1614, %v1615
        %v1617 = vrot.slane %v1502, 1
        %v1618 = vsel %vm455, %v1615, %v1617
        %v1619 = vrot.slane %v1503, 1
        %v1620 = vrot.slane %v1504, 1
        %v1621 = vsel %vm455, %v1619, %v1620
        %v1622 = vrot.slane %v1505, 1
        %v1623 = vsel %vm455, %v1620, %v1622
        %v1624 = vrot.slane %v1506, 1
        %v1625 = vrot.slane %v1507, 1
        %v1626 = vsel %vm455, %v1624, %v1625
        %v1627 = vrot.slane %v1508, 1
        %v1628 = vsel %vm455, %v1625, %v1627
        %v1629 = vrot.slane %v1509, 1
        %v1630 = vrot.slane %v1510, 1
        %v1631 = vsel %vm455, %v1629, %v1630
        %v1632 = vrot.slane %v1511, 1
        %v1633 = vsel %vm455, %v1630, %v1632
        %v1634 = vrot.slane %v1512, 1
        %v1635 = vrot.slane %v1513, 1
        %v1636 = vsel %vm455, %v1634, %v1635
        %v1637 = vrot.slane %v1514, 1
        %v1638 = vsel %vm455, %v1635, %v1637
        %v1639 = vrot.slane %v1515, 1
        %v1640 = vrot.slane %v1516, 1
        %v1641 = vsel %vm455, %v1639, %v1640
        %v1642 = vrot.slane %v1517, 1
        %v1643 = vsel %vm455, %v1640, %v1642
        %v1644 = vrot.slane %v1518, 1
        %v1645 = vrot.slane %v1519, 1
        %v1646 = vsel %vm455, %v1644, %v1645
        %v1647 = vrot.slane %v1520, 1
        %v1648 = vsel %vm455, %v1645, %v1647
        %v1681 = vadd.f32 %v1437, %v1571
        %v1682 = vadd.f32 %v1438, %v1573
        %v1683 = vadd.f32 %v1439, %v1576
        %v1684 = vadd.f32 %v1440, %v1578
        %v1685 = vadd.f32 %v1441, %v1581
        %v1686 = vadd.f32 %v1442, %v1583
        %v1687 = vadd.f32 %v1443, %v1586
        %v1688 = vadd.f32 %v1444, %v1588
        %v1689 = vadd.f32 %v1445, %v1591
        %v1690 = vadd.f32 %v1446, %v1593
        %v1691 = vadd.f32 %v1447, %v1596
        %v1692 = vadd.f32 %v1448, %v1598
        %v1693 = vadd.f32 %v1449, %v1601
        %v1694 = vadd.f32 %v1450, %v1603
        %v1695 = vadd.f32 %v1451, %v1606
        %v1696 = vadd.f32 %v1452, %v1608
        %v1697 = vadd.f32 %v1453, %v1611
        %v1698 = vadd.f32 %v1454, %v1613
        %v1699 = vadd.f32 %v1455, %v1616
        %v1700 = vadd.f32 %v1456, %v1618
        %v1701 = vadd.f32 %v1457, %v1621
        %v1702 = vadd.f32 %v1458, %v1623
        %v1703 = vadd.f32 %v1459, %v1626
        %v1704 = vadd.f32 %v1460, %v1628
        %v1705 = vadd.f32 %v1461, %v1631
        %v1706 = vadd.f32 %v1462, %v1633
        %v1707 = vadd.f32 %v1463, %v1636
        %v1708 = vadd.f32 %v1464, %v1638
        %v1709 = vadd.f32 %v1465, %v1641
        %v1710 = vadd.f32 %v1466, %v1643
        %v1711 = vadd.f32 %v1467, %v1646
        %v1712 = vadd.f32 %v1468, %v1648
        %v1713 = vlaneseq
        %v1714 = vshrl.u32 %v1713, 7
        %v1715 = vsub.s32 0, %v1714
        %v1716 = vrot.slane %v278, %v1715
        %v1717 = vmul.f32 %v229, %v1716
        %v1718 = vmul.f32 %v230, %v1716
        %v1719 = vmul.f32 %v231, %v1716
        %v1720 = vmul.f32 %v232, %v1716
        %v1721 = vmul.f32 %v233, %v1716
        %v1722 = vmul.f32 %v234, %v1716
        %v1723 = vmul.f32 %v235, %v1716
        %v1724 = vmul.f32 %v236, %v1716
        %v1725 = vmul.f32 %v237, %v1716
        %v1726 = vmul.f32 %v238, %v1716
        %v1727 = vmul.f32 %v239, %v1716
        %v1728 = vmul.f32 %v240, %v1716
        %v1729 = vmul.f32 %v241, %v1716
        %v1730 = vmul.f32 %v242, %v1716
        %v1731 = vmul.f32 %v243, %v1716
        %v1732 = vmul.f32 %v244, %v1716
        %v1733 = vmul.f32 %v245, %v1716
        %v1734 = vmul.f32 %v246, %v1716
        %v1735 = vmul.f32 %v247, %v1716
        %v1736 = vmul.f32 %v248, %v1716
        %v1737 = vmul.f32 %v249, %v1716
        %v1738 = vmul.f32 %v250, %v1716
        %v1739 = vmul.f32 %v251, %v1716
        %v1740 = vmul.f32 %v252, %v1716
        %v1741 = vmul.f32 %v253, %v1716
        %v1742 = vmul.f32 %v254, %v1716
        %v1743 = vmul.f32 %v255, %v1716
        %v1744 = vmul.f32 %v256, %v1716
        %v1745 = vmul.f32 %v257, %v1716
        %v1746 = vmul.f32 %v258, %v1716
        %v1747 = vmul.f32 %v259, %v1716
        %v1748 = vmul.f32 %v260, %v1716
        %v1749 = vmul.f32 %v261, %v1716
        %v1750 = vmul.f32 %v262, %v1716
        %v1751 = vmul.f32 %v263, %v1716
        %v1752 = vmul.f32 %v264, %v1716
        %v1753 = vmul.f32 %v265, %v1716
        %v1754 = vmul.f32 %v266, %v1716
        %v1755 = vmul.f32 %v267, %v1716
        %v1756 = vmul.f32 %v268, %v1716
        %v1757 = vmul.f32 %v269, %v1716
        %v1758 = vmul.f32 %v270, %v1716
        %v1759 = vmul.f32 %v271, %v1716
        %v1760 = vmul.f32 %v272, %v1716
        %v1761 = vmul.f32 %v273, %v1716
        %v1762 = vmul.f32 %v274, %v1716
        %v1763 = vmul.f32 %v275, %v1716
        %v1764 = vmul.f32 %v276, %v1716
        %v1813 = vrot.slane %v1717, 2
        %v1814 = vrot.slane %v1718, 2
        %v1815 = vsel %vm700, %v1813, %v1814
        %v1816 = vrot.slane %v1719, 2
        %v1817 = vsel %vm700, %v1814, %v1816
        %v1818 = vrot.slane %v1720, 2
        %v1819 = vrot.slane %v1721, 2
        %v1820 = vsel %vm700, %v1818, %v1819
        %v1821 = vrot.slane %v1722, 2
        %v1822 = vsel %vm700, %v1819, %v1821
        %v1823 = vrot.slane %v1723, 2
        %v1824 = vrot.slane %v1724, 2
        %v1825 = vsel %vm700, %v1823, %v1824
        %v1826 = vrot.slane %v1725, 2
        %v1827 = vsel %vm700, %v1824, %v1826
        %v1828 = vrot.slane %v1726, 2
        %v1829 = vrot.slane %v1727, 2
        %v1830 = vsel %vm700, %v1828, %v1829
        %v1831 = vrot.slane %v1728, 2
        %v1832 = vsel %vm700, %v1829, %v1831
        %v1833 = vrot.slane %v1729, 2
        %v1834 = vrot.slane %v1730, 2
        %v1835 = vsel %vm700, %v1833, %v1834
        %v1836 = vrot.slane %v1731, 2
        %v1837 = vsel %vm700, %v1834, %v1836
        %v1838 = vrot.slane %v1732, 2
        %v1839 = vrot.slane %v1733, 2
        %v1840 = vsel %vm700, %v1838, %v1839
        %v1841 = vrot.slane %v1734, 2
        %v1842 = vsel %vm700, %v1839, %v1841
        %v1843 = vrot.slane %v1735, 2
        %v1844 = vrot.slane %v1736, 2
        %v1845 = vsel %vm700, %v1843, %v1844
        %v1846 = vrot.slane %v1737, 2
        %v1847 = vsel %vm700, %v1844, %v1846
        %v1848 = vrot.slane %v1738, 2
        %v1849 = vrot.slane %v1739, 2
        %v1850 = vsel %vm700, %v1848, %v1849
        %v1851 = vrot.slane %v1740, 2
        %v1852 = vsel %vm700, %v1849, %v1851
        %v1853 = vrot.slane %v1741, 2
        %v1854 = vrot.slane %v1742, 2
        %v1855 = vsel %vm700, %v1853, %v1854
        %v1856 = vrot.slane %v1743, 2
        %v1857 = vsel %vm700, %v1854, %v1856
        %v1858 = vrot.slane %v1744, 2
        %v1859 = vrot.slane %v1745, 2
        %v1860 = vsel %vm700, %v1858, %v1859
        %v1861 = vrot.slane %v1746, 2
        %v1862 = vsel %vm700, %v1859, %v1861
        %v1863 = vrot.slane %v1747, 2
        %v1864 = vrot.slane %v1748, 2
        %v1865 = vsel %vm700, %v1863, %v1864
        %v1866 = vrot.slane %v1749, 2
        %v1867 = vsel %vm700, %v1864, %v1866
        %v1868 = vrot.slane %v1750, 2
        %v1869 = vrot.slane %v1751, 2
        %v1870 = vsel %vm700, %v1868, %v1869
        %v1871 = vrot.slane %v1752, 2
        %v1872 = vsel %vm700, %v1869, %v1871
        %v1873 = vrot.slane %v1753, 2
        %v1874 = vrot.slane %v1754, 2
        %v1875 = vsel %vm700, %v1873, %v1874
        %v1876 = vrot.slane %v1755, 2
        %v1877 = vsel %vm700, %v1874, %v1876
        %v1878 = vrot.slane %v1756, 2
        %v1879 = vrot.slane %v1757, 2
        %v1880 = vsel %vm700, %v1878, %v1879
        %v1881 = vrot.slane %v1758, 2
        %v1882 = vsel %vm700, %v1879, %v1881
        %v1883 = vrot.slane %v1759, 2
        %v1884 = vrot.slane %v1760, 2
        %v1885 = vsel %vm700, %v1883, %v1884
        %v1886 = vrot.slane %v1761, 2
        %v1887 = vsel %vm700, %v1884, %v1886
        %v1888 = vrot.slane %v1762, 2
        %v1889 = vrot.slane %v1763, 2
        %v1890 = vsel %vm700, %v1888, %v1889
        %v1891 = vrot.slane %v1764, 2
        %v1892 = vsel %vm700, %v1889, %v1891
        %v1925 = vadd.f32 %v1681, %v1815
        %v1926 = vadd.f32 %v1682, %v1817
        %v1927 = vadd.f32 %v1683, %v1820
        %v1928 = vadd.f32 %v1684, %v1822
        %v1929 = vadd.f32 %v1685, %v1825
        %v1930 = vadd.f32 %v1686, %v1827
        %v1931 = vadd.f32 %v1687, %v1830
        %v1932 = vadd.f32 %v1688, %v1832
        %v1933 = vadd.f32 %v1689, %v1835
        %v1934 = vadd.f32 %v1690, %v1837
        %v1935 = vadd.f32 %v1691, %v1840
        %v1936 = vadd.f32 %v1692, %v1842
        %v1937 = vadd.f32 %v1693, %v1845
        %v1938 = vadd.f32 %v1694, %v1847
        %v1939 = vadd.f32 %v1695, %v1850
        %v1940 = vadd.f32 %v1696, %v1852
        %v1941 = vadd.f32 %v1697, %v1855
        %v1942 = vadd.f32 %v1698, %v1857
        %v1943 = vadd.f32 %v1699, %v1860
        %v1944 = vadd.f32 %v1700, %v1862
        %v1945 = vadd.f32 %v1701, %v1865
        %v1946 = vadd.f32 %v1702, %v1867
        %v1947 = vadd.f32 %v1703, %v1870
        %v1948 = vadd.f32 %v1704, %v1872
        %v1949 = vadd.f32 %v1705, %v1875
        %v1950 = vadd.f32 %v1706, %v1877
        %v1951 = vadd.f32 %v1707, %v1880
        %v1952 = vadd.f32 %v1708, %v1882
        %v1953 = vadd.f32 %v1709, %v1885
        %v1954 = vadd.f32 %v1710, %v1887
        %v1955 = vadd.f32 %v1711, %v1890
        %v1956 = vadd.f32 %v1712, %v1892
        %v1957 = vmax.f32 %v1925, 0.0
        %v1958 = vmax.f32 %v1926, 0.0
        %v1959 = vmax.f32 %v1927, 0.0
        %v1960 = vmax.f32 %v1928, 0.0
        %v1961 = vmax.f32 %v1929, 0.0
        %v1962 = vmax.f32 %v1930, 0.0
        %v1963 = vmax.f32 %v1931, 0.0
        %v1964 = vmax.f32 %v1932, 0.0
        %v1965 = vmax.f32 %v1933, 0.0
        %v1966 = vmax.f32 %v1934, 0.0
        %v1967 = vmax.f32 %v1935, 0.0
        %v1968 = vmax.f32 %v1936, 0.0
        %v1969 = vmax.f32 %v1937, 0.0
        %v1970 = vmax.f32 %v1938, 0.0
        %v1971 = vmax.f32 %v1939, 0.0
        %v1972 = vmax.f32 %v1940, 0.0
        %v1973 = vmax.f32 %v1941, 0.0
        %v1974 = vmax.f32 %v1942, 0.0
        %v1975 = vmax.f32 %v1943, 0.0
        %v1976 = vmax.f32 %v1944, 0.0
        %v1977 = vmax.f32 %v1945, 0.0
        %v1978 = vmax.f32 %v1946, 0.0
        %v1979 = vmax.f32 %v1947, 0.0
        %v1980 = vmax.f32 %v1948, 0.0
        %v1981 = vmax.f32 %v1949, 0.0
        %v1982 = vmax.f32 %v1950, 0.0
        %v1983 = vmax.f32 %v1951, 0.0
        %v1984 = vmax.f32 %v1952, 0.0
        %v1985 = vmax.f32 %v1953, 0.0
        %v1986 = vmax.f32 %v1954, 0.0
        %v1987 = vmax.f32 %v1955, 0.0
        %v1988 = vmax.f32 %v1956, 0.0
        %v1989 = vld [vmem:[%s3] sm:$0xff]
        %v1990 = vld [vmem:[%s3 + $0x8] sm:$0xff]
        %v1991 = vld [vmem:[%s3 + $0x10] sm:$0xff]
        %v1992 = vld [vmem:[%s3 + $0x18] sm:$0xff]
        %v1993 = vld [vmem:[%s4] sm:$0x1]
        %v1995 = vlaneseq
        %v1996 = vshrl.u32 %v1995, 7
        %v1997 = vsub.s32 0, %v1996
        %v1998 = vrot.slane %v1993, %v1997
        %vm2000 = vcmask 261120
        %v2002 = vsel %vm2000, %v1957, 0
        %v2005 = vsel %vm2000, %v1958, 0
        %v2008 = vsel %vm2000, %v1959, 0
        %v2011 = vsel %vm2000, %v1960, 0
        %v2014 = vsel %vm2000, %v1961, 0
        %v2017 = vsel %vm2000, %v1962, 0
        %v2020 = vsel %vm2000, %v1963, 0
        %v2023 = vsel %vm2000, %v1964, 0
        %v2026 = vsel %vm2000, %v1965, 0
        %v2029 = vsel %vm2000, %v1966, 0
        %v2032 = vsel %vm2000, %v1967, 0
        %v2035 = vsel %vm2000, %v1968, 0
        %v2038 = vsel %vm2000, %v1969, 0
        %v2041 = vsel %vm2000, %v1970, 0
        %v2044 = vsel %vm2000, %v1971, 0
        %v2047 = vsel %vm2000, %v1972, 0
        %v2050 = vsel %vm2000, %v1973, 0
        %v2053 = vsel %vm2000, %v1974, 0
        %v2056 = vsel %vm2000, %v1975, 0
        %v2059 = vsel %vm2000, %v1976, 0
        %v2062 = vsel %vm2000, %v1977, 0
        %v2065 = vsel %vm2000, %v1978, 0
        %v2068 = vsel %vm2000, %v1979, 0
        %v2071 = vsel %vm2000, %v1980, 0
        %v2074 = vsel %vm2000, %v1981, 0
        %v2077 = vsel %vm2000, %v1982, 0
        %v2080 = vsel %vm2000, %v1983, 0
        %v2083 = vsel %vm2000, %v1984, 0
        %v2086 = vsel %vm2000, %v1985, 0
        %v2089 = vsel %vm2000, %v1986, 0
        %v2092 = vsel %vm2000, %v1987, 0
        %v2095 = vsel %vm2000, %v1988, 0
        %2097 = vmatprep.subr.mxu0 0.0
        %2098 = vmatpush1.msra.mxu0 %v1989
        %2099 = vmatprep.subr.mxu0 0.0
        %2100 = vmatpush1.msra.mxu0 %v1990
        %2101 = vmatprep.subr.mxu0 0.0
        %2102 = vmatpush1.msra.mxu0 %v1991
        %2103 = vmatprep.subr.mxu0 0.0
        %2104 = vmatpush1.msra.mxu0 %v1992
        %2105 = vmatprep.subr.mxu0 0.0
        %2106 = vmatpush1.msra.mxu0 0.0
        %2107 = vmatprep.subr.mxu0 0.0
        %2108 = vmatpush1.msra.mxu0 0.0
        %2109 = vmatprep.subr.mxu0 0.0
        %2110 = vmatpush1.msra.mxu0 0.0
        %2111 = vmatprep.subr.mxu0 0.0
        %2112 = vmatpush1.msra.mxu0 0.0
        %2113 = vmatprep.subr.mxu0 0.0
        %2114 = vmatpush1.msra.mxu0 0.0
        %2115 = vmatprep.subr.mxu0 0.0
        %2116 = vmatpush1.msra.mxu0 0.0
        %2117 = vmatprep.subr.mxu0 0.0
        %2118 = vmatpush1.msra.mxu0 0.0
        %2119 = vmatprep.subr.mxu0 0.0
        %2120 = vmatpush1.msra.mxu0 0.0
        %2121 = vmatprep.subr.mxu0 0.0
        %2122 = vmatpush1.msra.mxu0 0.0
        %2123 = vmatprep.subr.mxu0 0.0
        %2124 = vmatpush1.msra.mxu0 0.0
        %2125 = vmatprep.subr.mxu0 0.0
        %2126 = vmatpush1.msra.mxu0 0.0
        %2127 = vmatprep.subr.mxu0 0.0
        %2128 = vmatpush1.msra.mxu0 0.0
        %2129 = vmatprep.subr.mxu0 0.0
        %2130 = vmatpush1.msra.mxu0 0.0
        %2131 = vmatprep.subr.mxu0 0.0
        %2132 = vmatpush1.msra.mxu0 0.0
        %2133 = vmatprep.subr.mxu0 0.0
        %2134 = vmatpush1.msra.mxu0 0.0
        %2135 = vmatprep.subr.mxu0 0.0
        %2136 = vmatpush1.msra.mxu0 0.0
        %2137 = vmatprep.subr.mxu0 0.0
        %2138 = vmatpush1.msra.mxu0 0.0
        %2139 = vmatprep.subr.mxu0 0.0
        %2140 = vmatpush1.msra.mxu0 0.0
        %2141 = vmatprep.subr.mxu0 0.0
        %2142 = vmatpush1.msra.mxu0 0.0
        %2143 = vmatprep.subr.mxu0 0.0
        %2144 = vmatpush1.msra.mxu0 0.0
        %2145 = vmatprep.subr.mxu0 0.0
        %2146 = vmatpush1.msra.mxu0 0.0
        %2147 = vmatprep.subr.mxu0 0.0
        %2148 = vmatpush1.msra.mxu0 0.0
        %2149 = vmatprep.subr.mxu0 0.0
        %2150 = vmatpush1.msra.mxu0 0.0
        %2151 = vmatprep.subr.mxu0 0.0
        %2152 = vmatpush1.msra.mxu0 0.0
        %2153 = vmatprep.subr.mxu0 0.0
        %2154 = vmatpush1.msra.mxu0 0.0
        %2155 = vmatprep.subr.mxu0 0.0
        %2156 = vmatpush1.msra.mxu0 0.0
        %2157 = vmatprep.subr.mxu0 0.0
        %2158 = vmatpush1.msra.mxu0 0.0
        %2159 = vmatprep.subr.mxu0 0.0
        %2160 = vmatpush1.msra.mxu0 0.0
        %2161 = vmatprep.mubr.f32.mxu0 0.0
        %2162 = vmatmul.mubr.f32.gmra.mrb[0].mxu0 %v2002
        %v2163 = vpop.f32.mrb[0].mxu0
        %v2164 = vadd.f32 %v1998, %v2163
        %v2165 = vpop.f32.mrb[0].mxu0
        %2166 = vmatprep.mubr.f32.mxu0 0.0
        %2167 = vmatmul.mubr.f32.gmra.mrb[0].mxu0 %v2005
        %v2168 = vpop.f32.mrb[0].mxu0
        %v2169 = vadd.f32 %v1998, %v2168
        %v2170 = vpop.f32.mrb[0].mxu0
        %2171 = vmatprep.mubr.f32.mxu0 0.0
        %2172 = vmatmul.mubr.f32.gmra.mrb[0].mxu0 %v2008
        %v2173 = vpop.f32.mrb[0].mxu0
        %v2174 = vadd.f32 %v1998, %v2173
        %v2175 = vpop.f32.mrb[0].mxu0
        %2176 = vmatprep.mubr.f32.mxu0 0.0
        %2177 = vmatmul.mubr.f32.gmra.mrb[0].mxu0 %v2011
        %v2178 = vpop.f32.mrb[0].mxu0
        %v2179 = vadd.f32 %v1998, %v2178
        %v2180 = vpop.f32.mrb[0].mxu0
        %2181 = vmatprep.mubr.f32.mxu0 0.0
        %2182 = vmatmul.mubr.f32.gmra.mrb[0].mxu0 %v2014
        %v2183 = vpop.f32.mrb[0].mxu0
        %v2184 = vadd.f32 %v1998, %v2183
        %v2185 = vpop.f32.mrb[0].mxu0
        %2186 = vmatprep.mubr.f32.mxu0 0.0
        %2187 = vmatmul.mubr.f32.gmra.mrb[0].mxu0 %v2017
        %v2188 = vpop.f32.mrb[0].mxu0
        %v2189 = vadd.f32 %v1998, %v2188
        %v2190 = vpop.f32.mrb[0].mxu0
        %2191 = vmatprep.mubr.f32.mxu0 0.0
        %2192 = vmatmul.mubr.f32.gmra.mrb[0].mxu0 %v2020
        %v2193 = vpop.f32.mrb[0].mxu0
        %v2194 = vadd.f32 %v1998, %v2193
        %v2195 = vpop.f32.mrb[0].mxu0
        %2196 = vmatprep.mubr.f32.mxu0 0.0
        %2197 = vmatmul.mubr.f32.gmra.mrb[0].mxu0 %v2023
        %v2198 = vpop.f32.mrb[0].mxu0
        %v2199 = vadd.f32 %v1998, %v2198
        %v2200 = vpop.f32.mrb[0].mxu0
        %2201 = vmatprep.mubr.f32.mxu0 0.0
        %2202 = vmatmul.mubr.f32.gmra.mrb[0].mxu0 %v2026
        %v2203 = vpop.f32.mrb[0].mxu0
        %v2204 = vadd.f32 %v1998, %v2203
        %v2205 = vpop.f32.mrb[0].mxu0
        %2206 = vmatprep.mubr.f32.mxu0 0.0
        %2207 = vmatmul.mubr.f32.gmra.mrb[0].mxu0 %v2029
        %v2208 = vpop.f32.mrb[0].mxu0
        %v2209 = vadd.f32 %v1998, %v2208
        %v2210 = vpop.f32.mrb[0].mxu0
        %2211 = vmatprep.mubr.f32.mxu0 0.0
        %2212 = vmatmul.mubr.f32.gmra.mrb[0].mxu0 %v2032
        %v2213 = vpop.f32.mrb[0].mxu0
        %v2214 = vadd.f32 %v1998, %v2213
        %v2215 = vpop.f32.mrb[0].mxu0
        %2216 = vmatprep.mubr.f32.mxu0 0.0
        %2217 = vmatmul.mubr.f32.gmra.mrb[0].mxu0 %v2035
        %v2218 = vpop.f32.mrb[0].mxu0
        %v2219 = vadd.f32 %v1998, %v2218
        %v2220 = vpop.f32.mrb[0].mxu0
        %2221 = vmatprep.mubr.f32.mxu0 0.0
        %2222 = vmatmul.mubr.f32.gmra.mrb[0].mxu0 %v2038
        %v2223 = vpop.f32.mrb[0].mxu0
        %v2224 = vadd.f32 %v1998, %v2223
        %v2225 = vpop.f32.mrb[0].mxu0
        %2226 = vmatprep.mubr.f32.mxu0 0.0
        %2227 = vmatmul.mubr.f32.gmra.mrb[0].mxu0 %v2041
        %v2228 = vpop.f32.mrb[0].mxu0
        %v2229 = vadd.f32 %v1998, %v2228
        %v2230 = vpop.f32.mrb[0].mxu0
        %2231 = vmatprep.mubr.f32.mxu0 0.0
        %2232 = vmatmul.mubr.f32.gmra.mrb[0].mxu0 %v2044
        %v2233 = vpop.f32.mrb[0].mxu0
        %v2234 = vadd.f32 %v1998, %v2233
        %v2235 = vpop.f32.mrb[0].mxu0
        %2236 = vmatprep.mubr.f32.mxu0 0.0
        %2237 = vmatmul.mubr.f32.gmra.mrb[0].mxu0 %v2047
        %v2238 = vpop.f32.mrb[0].mxu0
        %v2239 = vadd.f32 %v1998, %v2238
        %v2240 = vpop.f32.mrb[0].mxu0
        %2241 = vmatprep.mubr.f32.mxu0 0.0
        %2242 = vmatmul.mubr.f32.gmra.mrb[0].mxu0 %v2050
        %v2243 = vpop.f32.mrb[0].mxu0
        %v2244 = vadd.f32 %v1998, %v2243
        %v2245 = vpop.f32.mrb[0].mxu0
        %2246 = vmatprep.mubr.f32.mxu0 0.0
        %2247 = vmatmul.mubr.f32.gmra.mrb[0].mxu0 %v2053
        %v2248 = vpop.f32.mrb[0].mxu0
        %v2249 = vadd.f32 %v1998, %v2248
        %v2250 = vpop.f32.mrb[0].mxu0
        %2251 = vmatprep.mubr.f32.mxu0 0.0
        %2252 = vmatmul.mubr.f32.gmra.mrb[0].mxu0 %v2056
        %v2253 = vpop.f32.mrb[0].mxu0
        %v2254 = vadd.f32 %v1998, %v2253
        %v2255 = vpop.f32.mrb[0].mxu0
        %2256 = vmatprep.mubr.f32.mxu0 0.0
        %2257 = vmatmul.mubr.f32.gmra.mrb[0].mxu0 %v2059
        %v2258 = vpop.f32.mrb[0].mxu0
        %v2259 = vadd.f32 %v1998, %v2258
        %v2260 = vpop.f32.mrb[0].mxu0
        %2261 = vmatprep.mubr.f32.mxu0 0.0
        %2262 = vmatmul.mubr.f32.gmra.mrb[0].mxu0 %v2062
        %v2263 = vpop.f32.mrb[0].mxu0
        %v2264 = vadd.f32 %v1998, %v2263
        %v2265 = vpop.f32.mrb[0].mxu0
        %2266 = vmatprep.mubr.f32.mxu0 0.0
        %2267 = vmatmul.mubr.f32.gmra.mrb[0].mxu0 %v2065
        %v2268 = vpop.f32.mrb[0].mxu0
        %v2269 = vadd.f32 %v1998, %v2268
        %v2270 = vpop.f32.mrb[0].mxu0
        %2271 = vmatprep.mubr.f32.mxu0 0.0
        %2272 = vmatmul.mubr.f32.gmra.mrb[0].mxu0 %v2068
        %v2273 = vpop.f32.mrb[0].mxu0
        %v2274 = vadd.f32 %v1998, %v2273
        %v2275 = vpop.f32.mrb[0].mxu0
        %2276 = vmatprep.mubr.f32.mxu0 0.0
        %2277 = vmatmul.mubr.f32.gmra.mrb[0].mxu0 %v2071
        %v2278 = vpop.f32.mrb[0].mxu0
        %v2279 = vadd.f32 %v1998, %v2278
        %v2280 = vpop.f32.mrb[0].mxu0
        %2281 = vmatprep.mubr.f32.mxu0 0.0
        %2282 = vmatmul.mubr.f32.gmra.mrb[0].mxu0 %v2074
        %v2283 = vpop.f32.mrb[0].mxu0
        %v2284 = vadd.f32 %v1998, %v2283
        %v2285 = vpop.f32.mrb[0].mxu0
        %2286 = vmatprep.mubr.f32.mxu0 0.0
        %2287 = vmatmul.mubr.f32.gmra.mrb[0].mxu0 %v2077
        %v2288 = vpop.f32.mrb[0].mxu0
        %v2289 = vadd.f32 %v1998, %v2288
        %v2290 = vpop.f32.mrb[0].mxu0
        %2291 = vmatprep.mubr.f32.mxu0 0.0
        %2292 = vmatmul.mubr.f32.gmra.mrb[0].mxu0 %v2080
        %v2293 = vpop.f32.mrb[0].mxu0
        %v2294 = vadd.f32 %v1998, %v2293
        %v2295 = vpop.f32.mrb[0].mxu0
        %2296 = vmatprep.mubr.f32.mxu0 0.0
        %2297 = vmatmul.mubr.f32.gmra.mrb[0].mxu0 %v2083
        %v2298 = vpop.f32.mrb[0].mxu0
        %v2299 = vadd.f32 %v1998, %v2298
        %v2300 = vpop.f32.mrb[0].mxu0
        %2301 = vmatprep.mubr.f32.mxu0 0.0
        %2302 = vmatmul.mubr.f32.gmra.mrb[0].mxu0 %v2086
        %v2303 = vpop.f32.mrb[0].mxu0
        %v2304 = vadd.f32 %v1998, %v2303
        %v2305 = vpop.f32.mrb[0].mxu0
        %2306 = vmatprep.mubr.f32.mxu0 0.0
        %2307 = vmatmul.mubr.f32.gmra.mrb[0].mxu0 %v2089
        %v2308 = vpop.f32.mrb[0].mxu0
        %v2309 = vadd.f32 %v1998, %v2308
        %v2310 = vpop.f32.mrb[0].mxu0
        %2311 = vmatprep.mubr.f32.mxu0 0.0
        %2312 = vmatmul.mubr.f32.gmra.mrb[0].mxu0 %v2092
        %v2313 = vpop.f32.mrb[0].mxu0
        %v2314 = vadd.f32 %v1998, %v2313
        %v2315 = vpop.f32.mrb[0].mxu0
        %2316 = vmatprep.mubr.f32.mxu0 0.0
        %2317 = vmatmul.mubr.f32.gmra.mrb[0].mxu0 %v2095
        %v2318 = vpop.f32.mrb[0].mxu0
        %v2319 = vadd.f32 %v1998, %v2318
        %v2320 = vpop.f32.mrb[0].mxu0
        %2321 = vdwg.mxu0
        %vm2322 = vcmask 523264
        %2323 = vst.msk [vmem:[%s217] sm:$0xff] %vm2322, %v2164
        %2324 = vst.msk [vmem:[%s217 + $0x8] sm:$0xff] %vm2322, %v2169
        %2325 = vst.msk [vmem:[%s217 + $0x10] sm:$0xff] %vm2322, %v2174
        %2326 = vst.msk [vmem:[%s217 + $0x18] sm:$0xff] %vm2322, %v2179
        %2327 = vst.msk [vmem:[%s217 + $0x20] sm:$0xff] %vm2322, %v2184
        %2328 = vst.msk [vmem:[%s217 + $0x28] sm:$0xff] %vm2322, %v2189
        %2329 = vst.msk [vmem:[%s217 + $0x30] sm:$0xff] %vm2322, %v2194
        %2330 = vst.msk [vmem:[%s217 + $0x38] sm:$0xff] %vm2322, %v2199
        %2331 = vst.msk [vmem:[%s217 + $0x40] sm:$0xff] %vm2322, %v2204
        %2332 = vst.msk [vmem:[%s217 + $0x48] sm:$0xff] %vm2322, %v2209
        %2333 = vst.msk [vmem:[%s217 + $0x50] sm:$0xff] %vm2322, %v2214
        %2334 = vst.msk [vmem:[%s217 + $0x58] sm:$0xff] %vm2322, %v2219
        %2335 = vst.msk [vmem:[%s217 + $0x60] sm:$0xff] %vm2322, %v2224
        %2336 = vst.msk [vmem:[%s217 + $0x68] sm:$0xff] %vm2322, %v2229
        %2337 = vst.msk [vmem:[%s217 + $0x70] sm:$0xff] %vm2322, %v2234
        %2338 = vst.msk [vmem:[%s217 + $0x78] sm:$0xff] %vm2322, %v2239
        %2339 = vst.msk [vmem:[%s217 + $0x80] sm:$0xff] %vm2322, %v2244
        %2340 = vst.msk [vmem:[%s217 + $0x88] sm:$0xff] %vm2322, %v2249
        %2341 = vst.msk [vmem:[%s217 + $0x90] sm:$0xff] %vm2322, %v2254
        %2342 = vst.msk [vmem:[%s217 + $0x98] sm:$0xff] %vm2322, %v2259
        %2343 = vst.msk [vmem:[%s217 + $0xa0] sm:$0xff] %vm2322, %v2264
        %2344 = vst.msk [vmem:[%s217 + $0xa8] sm:$0xff] %vm2322, %v2269
        %2345 = vst.msk [vmem:[%s217 + $0xb0] sm:$0xff] %vm2322, %v2274
        %2346 = vst.msk [vmem:[%s217 + $0xb8] sm:$0xff] %vm2322, %v2279
        %2347 = vst.msk [vmem:[%s217 + $0xc0] sm:$0xff] %vm2322, %v2284
        %2348 = vst.msk [vmem:[%s217 + $0xc8] sm:$0xff] %vm2322, %v2289
        %2349 = vst.msk [vmem:[%s217 + $0xd0] sm:$0xff] %vm2322, %v2294
        %2350 = vst.msk [vmem:[%s217 + $0xd8] sm:$0xff] %vm2322, %v2299
        %2351 = vst.msk [vmem:[%s217 + $0xe0] sm:$0xff] %vm2322, %v2304
        %2352 = vst.msk [vmem:[%s217 + $0xe8] sm:$0xff] %vm2322, %v2309
        %2353 = vst.msk [vmem:[%s217 + $0xf0] sm:$0xff] %vm2322, %v2314
        %2354 = vst.msk [vmem:[%s217 + $0xf8] sm:$0xff] %vm2322, %v2319
        %s2355 = sand.u32 %s137, 1
        %s2356 = scalar_lea.sflag [#allocation3], %s2355
        %s2357 = sand.u32 %s137, 1
        %s2358 = smul.addr %s2357, 256
        %s2359 = scalar_lea.vmem [#allocation2], %s2358
        // Predicated region
        $region41: #{tpu_custom_call.1} parent=39 // pred_check
          %p2360 = pneg %p147
        $region42: #{tpu_custom_call.1} parent=39 // pred_check_branch
          %2362 = sbr.rel (%p2360) target = $region44
        $region43: #{tpu_custom_call.1} parent=39 // pred_region
          %s2364 = ssub.s32 4096, 4096
          %2365 = vsyncadd %s2356, %s2364
          %s2366 = smul.addr %s19, 32
          %s2367 = smul.addr %s2366, 128
          %s2368 = scalar_lea.hbm %s5, %s2367
          %s2369 = sshll.u32 %s2359, 4
          %s2370 = int_to_ptr.vmem [resolvable:$true] %s2369
          %2375 = dma.vmem_to_hbm [thread:$0]  %s2370, 4096, %s2368, %s2356, 128, 128, 8
        $region44: #{tpu_custom_call.1} parent=39 // pred_fallthru
          _
      $region40: #{tpu_custom_call.1} parent=5 // pred_fallthru
        _
      %p2376 = scmp.le.s32.totalorder 2, %s14
      // Predicated region
      $region45: #{tpu_custom_call.1} parent=5 // pred_check
        %p2377 = pneg %p2376
      $region46: #{tpu_custom_call.1} parent=5 // pred_check_branch
        %2379 = sbr.rel (%p2377) target = $region48
      $region47: #{tpu_custom_call.1} parent=5 // pred_region
        %s2380 = ssub.s32 %s14, 2
        // Predicated region
        $region49: #{tpu_custom_call.1} parent=47 // pred_check
          %p2381 = pneg %p153
        $region50: #{tpu_custom_call.1} parent=47 // pred_check_branch
          %2383 = sbr.rel (%p2381) target = $region52
        $region51: #{tpu_custom_call.1} parent=47 // pred_region
          %s2384 = sand.u32 %s138, 1
          %s2385 = scalar_lea.sflag [#allocation3], %s2384
          %s2386 = sand.u32 %s138, 1
          %s2387 = smul.addr %s2386, 256
          %s2388 = scalar_lea.vmem [#allocation2], %s2387
          %2389 = dma.done %s2385, 4096
        $region52: #{tpu_custom_call.1} parent=47 // pred_fallthru
          _
      $region48: #{tpu_custom_call.1} parent=5 // pred_fallthru
        _
    $region6: #{tpu_custom_call.1} parent=1 // loop_footer
      %s18 = sadd.s32 1, %s14
    $region7: #{tpu_custom_call.1} parent=1 // loop_footer_branch
      %13 = sbr.rel target = $region3
    $region8: #{tpu_custom_call.1} parent=1 // loop_exit
      _
    %2390 = vsyncpa [#allocation3], 1
    %s2391 = scalar_lea.sflag [#allocation3], 1
    %2392 = vsyncpa %s2391, 1

</llo_original>
